<compile_context>
chip_gen: v5e
topology: v5e:2x2
jax: 0.10.0
libtpu: 0.0.40
codegen_flags: <defaults>
</compile_context>

<pallas_src>
import functools

import jax
import jax.numpy as jnp
from jax.experimental import pallas as pl
from jax.experimental.pallas import tpu as pltpu

NEG_SLOPE = 0.01  # nn.LeakyReLU default negative_slope


def _leaky_relu(v):
    return jnp.where(v >= 0, v, NEG_SLOPE * v)


def _round_up(v, m):
    return ((v + m - 1) // m) * m


def _pad2(a, rows, cols):
    out = jnp.zeros((rows, cols), a.dtype)
    return out.at[:a.shape[0], :a.shape[1]].set(a)


def _lstm_estimator_kernel(n_dense, n_est, T, BT, H, *refs):
    # refs: x, (Wd_i, bd_i)*n_dense, W_ih, b_lstm, W_hh,
    #       (We_i, be_i)*n_est, out, xg_scratch, acc_scratch
    idx = 0
    x_ref = refs[idx]; idx += 1
    dense_params = []
    for _ in range(n_dense):
        dense_params.append((refs[idx], refs[idx + 1])); idx += 2
    wih_ref, bl_ref = refs[idx], refs[idx + 1]; idx += 2
    whh_ref = refs[idx]; idx += 1
    est_params = []
    for _ in range(n_est):
        est_params.append((refs[idx], refs[idx + 1])); idx += 2
    out_ref = refs[idx]; idx += 1
    xg_ref = refs[idx]; idx += 1          # VMEM scratch (T, BT, 4H) f32
    acc_ref = refs[idx]                   # VMEM scratch (BT, head0_pad) f32

    # --- Phase 1 (off the serial chain): dense stack + fused input-side gate
    # projection, chunked per timestep so intermediates stay O(BT) vregs, and
    # staged to VMEM scratch with one full-128-lane store per step.
    # bf16 operands, f32 accumulation (non-recurrent matmuls only).
    dense_wb = [(w_ref[...], b_ref[...]) for w_ref, b_ref in dense_params]
    w_ih = wih_ref[...]                   # (lstm_in, 4H) bf16, gate-pre-scaled
    b_l = bl_ref[...]                     # (1, 4H) f32, gate-pre-scaled
    for t in range(T):
        f_t = x_ref[t].astype(jnp.bfloat16)                        # (BT, F)
        for w, b in dense_wb:
            z = jnp.dot(f_t, w, preferred_element_type=jnp.float32) + b
            f_t = _leaky_relu(z).astype(jnp.bfloat16)
        xg_ref[t] = jnp.dot(f_t, w_ih, preferred_element_type=jnp.float32) + b_l

    # --- Phase 2: LSTM recurrence.  One (BT,H)@(H,4H) f32 MXU matmul and one
    # fused 4H-wide tanh per step; sigmoid for i/f/o is realized as
    # 0.5*(tanh + 1) because those weight columns were pre-scaled by 0.5.
    whh = whh_ref[...]                    # (H, 4H) f32, gate-pre-scaled
    ew0_ref, eb0_ref = est_params[0]

    acc_ref[...] = jnp.zeros_like(acc_ref)
    h_t = jnp.zeros((BT, H), jnp.float32)
    c_t = jnp.zeros((BT, H), jnp.float32)

    # seq_len is small and static -> fully unrolled recurrence.
    # TODO(synk): for large T switch to lax.fori_loop with h/c carried via
    # VMEM scratch to bound the unrolled body's live ranges.
    for t in range(T):
        pre = xg_ref[t] + jnp.dot(h_t, whh, preferred_element_type=jnp.float32)
        tt = jnp.tanh(pre)                # single fused EUP push over 4H lanes
        t_i = tt[:, 0 * H:1 * H]
        t_f = tt[:, 1 * H:2 * H]
        t_g = tt[:, 2 * H:3 * H]
        t_o = tt[:, 3 * H:4 * H]
        c_t = 0.5 * ((t_f + 1.0) * c_t + (t_i + 1.0) * t_g)
        h_t = (0.5 * (t_o + 1.0)) * jnp.tanh(c_t)
        # Folded first estimator matmul: static sublane-aligned REF slice read
        # per step (no big resident weight value), accumulated into VMEM
        # scratch -- MXU / vld / vst filler off the recurrent dependency chain.
        acc_ref[...] = acc_ref[...] + jnp.dot(
            h_t.astype(jnp.bfloat16), ew0_ref[t * H:(t + 1) * H, :],
            preferred_element_type=jnp.float32)

    # --- Phase 3: remaining estimator head (widths pre-padded to 128 lanes,
    # so every matmul and the final store are lane-dense).
    z = _leaky_relu(acc_ref[...] + eb0_ref[...])
    for li in range(1, n_est):
        w_ref, b_ref = est_params[li]
        z = jnp.dot(z.astype(jnp.bfloat16), w_ref[...],
                    preferred_element_type=jnp.float32) + b_ref[...]
        if li < n_est - 1:
            z = _leaky_relu(z)
    out_ref[...] = z


def _cost_estimate(Bp, T, F, H, dense_w, w_ih, w_hh, est_w):
    m = T * Bp
    flops = 0
    for w in dense_w:
        flops += 2 * m * w.shape[0] * w.shape[1]
    flops += 2 * m * w_ih.shape[0] * w_ih.shape[1]
    flops += 2 * T * Bp * H * w_hh.shape[1]              # recurrent gates
    flops += 2 * T * Bp * H * est_w[0].shape[1]          # folded head-0
    for w in est_w[1:]:
        flops += 2 * Bp * w.shape[0] * w.shape[1]
    transcendentals = T * Bp * (4 * H + H)               # fused tanh + tanh(c)
    param_bytes = sum(int(a.size) * a.dtype.itemsize
                      for a in dense_w + [w_ih, w_hh] + est_w)
    bytes_accessed = param_bytes + Bp * T * F * 4 + Bp * est_w[-1].shape[1] * 4
    return pl.CostEstimate(flops=int(flops),
                           transcendentals=int(transcendentals),
                           bytes_accessed=int(bytes_accessed))


def lstm_estimator_forward(x, params, *, seq_len):
    B, T, F = x.shape
    assert T == seq_len
    H = params["w_hh"].shape[0]
    H4 = 4 * H
    # Layout note: the fused 128-lane gate math assumes 4*H % 128 == 0 (H=32
    # here).  Other hidden sizes remain numerically correct but fall off the
    # intended lane-dense layout.

    # Batch tiling: pad to a multiple of 8, raise the tile toward the MXU row
    # height, keep >=2 grid steps when the padded batch allows (v7x two-TC
    # sharding of the "parallel" axis).  Cap 64 to stay inside the vreg file.
    B8 = _round_up(B, 8)
    if B8 <= 8:
        bt = 8
    elif B8 < 128:
        bt = _round_up((B8 + 1) // 2, 8)
    else:
        bt = 64
    Bp = _round_up(B8, bt)

    # Glue (pure JAX): pad + time-major transpose so per-step slices in the
    # kernel are contiguous and sublane-aligned.
    xp = jnp.zeros((Bp, T, F), jnp.float32).at[:B].set(x.astype(jnp.float32))
    x_tm = jnp.transpose(xp, (1, 0, 2))                  # (T, Bp, F)

    # Fold the sigmoid-via-tanh input scaling (0.5 for i/f/o, 1.0 for g) into
    # the LSTM weights/bias.  Scaling by 0.5 is exact in f32/bf16.
    gate_scale = jnp.concatenate(
        [jnp.full((H,), 0.5, jnp.float32), jnp.full((H,), 0.5, jnp.float32),
         jnp.ones((H,), jnp.float32), jnp.full((H,), 0.5, jnp.float32)])
    w_ih_s = (params["w_ih"] * gate_scale).astype(jnp.bfloat16)
    b_lstm_s = (params["b_lstm"] * gate_scale).astype(jnp.float32)
    w_hh_s = (params["w_hh"] * gate_scale).astype(jnp.float32)   # stays f32

    dense_w = [w.astype(jnp.bfloat16) for w in params["dense_w"]]
    dense_b = [b.astype(jnp.float32) for b in params["dense_b"]]

    # Estimator head: zero-pad widths (100/50/10/1) to 128 lanes (exact).
    est_w_p, est_b_p = [], []
    prev_cols = None
    for li, (w, b) in enumerate(zip(params["est_w"], params["est_b"])):
        rows = w.shape[0] if li == 0 else prev_cols
        cols = _round_up(w.shape[1], 128)
        est_w_p.append(_pad2(w.astype(jnp.float32), rows, cols).astype(jnp.bfloat16))
        est_b_p.append(_pad2(b.astype(jnp.float32), 1, cols))
        prev_cols = cols
    head0_pad = est_w_p[0].shape[1]
    n_out_pad = est_w_p[-1].shape[1]

    inputs = [x_tm]
    for w, b in zip(dense_w, dense_b):
        inputs += [w, b]
    inputs += [w_ih_s, b_lstm_s, w_hh_s]
    for w, b in zip(est_w_p, est_b_p):
        inputs += [w, b]

    def invariant_spec(a):
        nd = a.ndim
        return pl.BlockSpec(a.shape, lambda i, _nd=nd: (0,) * _nd)

    in_specs = [pl.BlockSpec((T, bt, F), lambda i: (0, i, 0))]
    in_specs += [invariant_spec(a) for a in inputs[1:]]

    kernel = functools.partial(
        _lstm_estimator_kernel, len(dense_w), len(est_w_p), T, bt, H)

    # Explicit VMEM budget (double-buffered inputs/outputs + scratch), clamped
    # to <=16 MiB so the same choice fits every generation (v5e 16 MiB scoped
    # default; v7x 64 MiB physical / 32 MiB scoped default).
    weight_bytes = sum(int(a.size) * a.dtype.itemsize for a in inputs[1:])
    need = (2 * (weight_bytes + T * bt * F * 4 + bt * n_out_pad * 4)
            + T * bt * H4 * 4 + bt * head0_pad * 4)
    vmem_limit = int(min(max(4 * need, 8 << 20), 16 << 20))

    out = pl.pallas_call(
        kernel,
        out_shape=jax.ShapeDtypeStruct((Bp, n_out_pad), jnp.float32),
        grid=(Bp // bt,),                     # batch-tile axis, megacore-able
        in_specs=in_specs,
        out_specs=pl.BlockSpec((bt, n_out_pad), lambda i: (i, 0)),
        scratch_shapes=[pltpu.VMEM((T, bt, H4), jnp.float32),
                        pltpu.VMEM((bt, head0_pad), jnp.float32)],
        compiler_params=pltpu.CompilerParams(
            dimension_semantics=("parallel",),
            vmem_limit_bytes=vmem_limit),
        cost_estimate=_cost_estimate(Bp, T, F, H, dense_w, w_ih_s, w_hh_s,
                                     est_w_p),
    )(*inputs)
    return out[:B, :1]


def init_params(key, feature_size, initial_dense_layer_size,
                dense_parameter_multiplier, dense_layer_count,
                lstm_hidden_units, sequence_length):
    keys = list(jax.random.split(key, 32))
    ki = iter(keys)

    dense_w, dense_b = [], []
    input_size = feature_size
    dense_output_size = initial_dense_layer_size
    for _ in range(dense_layer_count):
        dense_w.append(0.1 * jax.random.normal(
            next(ki), (input_size, dense_output_size), jnp.float32))
        dense_b.append(0.1 * jax.random.normal(
            next(ki), (1, dense_output_size), jnp.float32))
        input_size = dense_output_size
        dense_output_size = int(input_size * dense_parameter_multiplier)

    # LSTM input width = ACTUAL width of the last dense layer (fixes the
    # int(dense_output_size / multiplier) reconstruction for non-integer
    # multipliers flagged in the review).
    lstm_in = input_size
    H = lstm_hidden_units
    w_ih = 0.1 * jax.random.normal(next(ki), (lstm_in, 4 * H), jnp.float32)
    w_hh = 0.1 * jax.random.normal(next(ki), (H, 4 * H), jnp.float32)
    b_ih = 0.1 * jax.random.normal(next(ki), (1, 4 * H), jnp.float32)
    b_hh = 0.1 * jax.random.normal(next(ki), (1, 4 * H), jnp.float32)

    est_sizes = [(H * sequence_length, 100), (100, 50), (50, 10), (10, 1)]
    est_w, est_b = [], []
    for fin, fout in est_sizes:
        est_w.append(0.1 * jax.random.normal(next(ki), (fin, fout), jnp.float32))
        est_b.append(0.1 * jax.random.normal(next(ki), (1, fout), jnp.float32))

    return dict(dense_w=dense_w, dense_b=dense_b, w_ih=w_ih, w_hh=w_hh,
                b_lstm=b_ih + b_hh, est_w=est_w, est_b=est_b)


def reference_forward(x, params):
    """Pure-JAX f32 reference with PyTorch forward semantics (eval mode)."""
    B, T, _ = x.shape
    H = params["w_hh"].shape[0]
    z = x.reshape(B * T, -1)
    for w, b in zip(params["dense_w"], params["dense_b"]):
        z = _leaky_relu(z @ w + b)
    seq = z.reshape(B, T, -1)
    h = jnp.zeros((B, H), jnp.float32)
    c = jnp.zeros((B, H), jnp.float32)
    hs = []
    for t in range(T):
        g = seq[:, t, :] @ params["w_ih"] + params["b_lstm"] + h @ params["w_hh"]
        i_g = jax.nn.sigmoid(g[:, :H])
        f_g = jax.nn.sigmoid(g[:, H:2 * H])
        g_g = jnp.tanh(g[:, 2 * H:3 * H])
        o_g = jax.nn.sigmoid(g[:, 3 * H:])
        c = f_g * c + i_g * g_g
        h = o_g * jnp.tanh(c)
        hs.append(h)
    z = jnp.concatenate(hs, axis=1)
    n = len(params["est_w"])
    for li, (w, b) in enumerate(zip(params["est_w"], params["est_b"])):
        z = z @ w + b
        if li < n - 1:
            z = _leaky_relu(z)
    return z


if __name__ == "__main__":
    # Small config consistent with the module's __init__ / forward.
    feature_size = 8
    initial_dense_layer_size = 32
    dense_parameter_multiplier = 1.0
    dense_layer_count = 2
    lstm_layer_count = 1  # single-layer LSTM
    # TODO(synk): multi-layer LSTM stacking + inter-layer dropout (train-mode
    # only) not implemented; semantics here match eval-mode, num_layers=1.
    lstm_hidden_units = 32
    sequence_length = 8
    batch = 2

    key = jax.random.PRNGKey(0)
    pkey, xkey = jax.random.split(key)
    params = init_params(pkey, feature_size, initial_dense_layer_size,
                         dense_parameter_multiplier, dense_layer_count,
                         lstm_hidden_units, sequence_length)
    x = jax.random.normal(
        xkey, (batch, sequence_length, feature_size), jnp.float32)

    out = lstm_estimator_forward(x, params, seq_len=sequence_length)
    out = jax.block_until_ready(out)

    ref = reference_forward(x, params)
    assert out.shape == (batch, 1)
    assert bool(jnp.all(jnp.isfinite(out)))
    # Tolerance 2e-2: non-recurrent matmuls use bf16 operands (f32 accumulate)
    # per the perf review; the recurrent chain itself is exact-equivalent f32.
    assert bool(jnp.allclose(out, ref, atol=2e-2, rtol=2e-2)), (out, ref)
    print("KERNEL_OK")
</pallas_src>

<mosaic_0001>
module attributes {stable_mosaic.version = 11 : i64} {
  func.func @_lstm_estimator_kernel(%arg0: i32, %arg1: memref<8x8x8xf32, #tpu.memory_space<vmem>>, %arg2: memref<8x32xbf16, #tpu.memory_space<vmem>>, %arg3: memref<1x32xf32, #tpu.memory_space<vmem>>, %arg4: memref<32x32xbf16, #tpu.memory_space<vmem>>, %arg5: memref<1x32xf32, #tpu.memory_space<vmem>>, %arg6: memref<32x128xbf16, #tpu.memory_space<vmem>>, %arg7: memref<1x128xf32, #tpu.memory_space<vmem>>, %arg8: memref<32x128xf32, #tpu.memory_space<vmem>>, %arg9: memref<256x128xbf16, #tpu.memory_space<vmem>>, %arg10: memref<1x128xf32, #tpu.memory_space<vmem>>, %arg11: memref<128x128xbf16, #tpu.memory_space<vmem>>, %arg12: memref<1x128xf32, #tpu.memory_space<vmem>>, %arg13: memref<128x128xbf16, #tpu.memory_space<vmem>>, %arg14: memref<1x128xf32, #tpu.memory_space<vmem>>, %arg15: memref<128x128xbf16, #tpu.memory_space<vmem>>, %arg16: memref<1x128xf32, #tpu.memory_space<vmem>>, %arg17: memref<8x128xf32, #tpu.memory_space<vmem>>, %arg18: memref<8x8x128xf32, #tpu.memory_space<vmem>>, %arg19: memref<8x128xf32, #tpu.memory_space<vmem>>) attributes {dimension_semantics = [#tpu.dimension_semantics<parallel>], iteration_bounds = array<i64: 1>, scalar_prefetch = 0 : i64, scratch_operands = 2 : i64, tpu.core_type = #tpu.core_type<tc>, window_params = [{transform_indices = @transform_0, window_bounds = array<i64: 8, 8, 8>}, {pipeline_mode = #tpu.pipeline_mode<synchronous>, transform_indices = @transform_1, window_bounds = array<i64: 8, 32>}, {pipeline_mode = #tpu.pipeline_mode<synchronous>, transform_indices = @transform_2, window_bounds = array<i64: 1, 32>}, {pipeline_mode = #tpu.pipeline_mode<synchronous>, transform_indices = @transform_3, window_bounds = array<i64: 32, 32>}, {pipeline_mode = #tpu.pipeline_mode<synchronous>, transform_indices = @transform_4, window_bounds = array<i64: 1, 32>}, {pipeline_mode = #tpu.pipeline_mode<synchronous>, transform_indices = @transform_5, window_bounds = array<i64: 32, 128>}, {pipeline_mode = #tpu.pipeline_mode<synchronous>, transform_indices = @transform_6, window_bounds = array<i64: 1, 128>}, {pipeline_mode = #tpu.pipeline_mode<synchronous>, transform_indices = @transform_7, window_bounds = array<i64: 32, 128>}, {pipeline_mode = #tpu.pipeline_mode<synchronous>, transform_indices = @transform_8, window_bounds = array<i64: 256, 128>}, {pipeline_mode = #tpu.pipeline_mode<synchronous>, transform_indices = @transform_9, window_bounds = array<i64: 1, 128>}, {pipeline_mode = #tpu.pipeline_mode<synchronous>, transform_indices = @transform_10, window_bounds = array<i64: 128, 128>}, {pipeline_mode = #tpu.pipeline_mode<synchronous>, transform_indices = @transform_11, window_bounds = array<i64: 1, 128>}, {pipeline_mode = #tpu.pipeline_mode<synchronous>, transform_indices = @transform_12, window_bounds = array<i64: 128, 128>}, {pipeline_mode = #tpu.pipeline_mode<synchronous>, transform_indices = @transform_13, window_bounds = array<i64: 1, 128>}, {pipeline_mode = #tpu.pipeline_mode<synchronous>, transform_indices = @transform_14, window_bounds = array<i64: 128, 128>}, {pipeline_mode = #tpu.pipeline_mode<synchronous>, transform_indices = @transform_15, window_bounds = array<i64: 1, 128>}, {transform_indices = @transform_16, window_bounds = array<i64: 8, 128>}]} {
    %c0 = arith.constant 0 : index
    %c0_0 = arith.constant 0 : index
    %0 = vector.load %arg2[%c0, %c0_0] : memref<8x32xbf16, #tpu.memory_space<vmem>>, vector<8x32xbf16>
    %c0_1 = arith.constant 0 : index
    %c0_2 = arith.constant 0 : index
    %1 = vector.load %arg3[%c0_1, %c0_2] : memref<1x32xf32, #tpu.memory_space<vmem>>, vector<1x32xf32>
    %c0_3 = arith.constant 0 : index
    %c0_4 = arith.constant 0 : index
    %2 = vector.load %arg4[%c0_3, %c0_4] : memref<32x32xbf16, #tpu.memory_space<vmem>>, vector<32x32xbf16>
    %c0_5 = arith.constant 0 : index
    %c0_6 = arith.constant 0 : index
    %3 = vector.load %arg5[%c0_5, %c0_6] : memref<1x32xf32, #tpu.memory_space<vmem>>, vector<1x32xf32>
    %c0_7 = arith.constant 0 : index
    %c0_8 = arith.constant 0 : index
    %4 = vector.load %arg6[%c0_7, %c0_8] : memref<32x128xbf16, #tpu.memory_space<vmem>>, vector<32x128xbf16>
    %c0_9 = arith.constant 0 : index
    %c0_10 = arith.constant 0 : index
    %5 = vector.load %arg7[%c0_9, %c0_10] : memref<1x128xf32, #tpu.memory_space<vmem>>, vector<1x128xf32>
    %c0_11 = arith.constant 0 : index
    %c0_12 = arith.constant 0 : index
    %c0_13 = arith.constant 0 : index
    %6 = vector.load %arg1[%c0_11, %c0_12, %c0_13] : memref<8x8x8xf32, #tpu.memory_space<vmem>>, vector<1x8x8xf32>
    %7 = vector.shape_cast %6 : vector<1x8x8xf32> to vector<8x8xf32>
    %8 = arith.truncf %7 : vector<8x8xf32> to vector<8x8xbf16>
    %cst = arith.constant dense<0.000000e+00> : vector<8x32xf32>
    %9 = tpu.matmul %8, %0, %cst {dimension_numbers = #tpu.dot_dimension_numbers<[1], [0], [0], [1], [0, 0, 1, 1], [], []>} : vector<8x8xbf16>, vector<8x32xbf16>, vector<8x32xf32> -> vector<8x32xf32>
    %10 = vector.broadcast %1 : vector<1x32xf32> to vector<8x32xf32>
    %11 = arith.addf %9, %10 : vector<8x32xf32>
    %cst_14 = arith.constant 0.000000e+00 : f32
    %12 = vector.broadcast %cst_14 : f32 to vector<8x32xf32>
    %13 = arith.cmpf oge, %11, %12 : vector<8x32xf32>
    %cst_15 = arith.constant 0.00999999977 : f32
    %14 = vector.broadcast %cst_15 : f32 to vector<8x32xf32>
    %15 = arith.mulf %14, %11 : vector<8x32xf32>
    %16 = arith.select %13, %11, %15 : vector<8x32xi1>, vector<8x32xf32>
    %17 = arith.truncf %16 : vector<8x32xf32> to vector<8x32xbf16>
    %cst_16 = arith.constant dense<0.000000e+00> : vector<8x32xf32>
    %18 = tpu.matmul %17, %2, %cst_16 {dimension_numbers = #tpu.dot_dimension_numbers<[1], [0], [0], [1], [0, 0, 1, 1], [], []>} : vector<8x32xbf16>, vector<32x32xbf16>, vector<8x32xf32> -> vector<8x32xf32>
    %19 = vector.broadcast %3 : vector<1x32xf32> to vector<8x32xf32>
    %20 = arith.addf %18, %19 : vector<8x32xf32>
    %cst_17 = arith.constant 0.000000e+00 : f32
    %21 = vector.broadcast %cst_17 : f32 to vector<8x32xf32>
    %22 = arith.cmpf oge, %20, %21 : vector<8x32xf32>
    %cst_18 = arith.constant 0.00999999977 : f32
    %23 = vector.broadcast %cst_18 : f32 to vector<8x32xf32>
    %24 = arith.mulf %23, %20 : vector<8x32xf32>
    %25 = arith.select %22, %20, %24 : vector<8x32xi1>, vector<8x32xf32>
    %26 = arith.truncf %25 : vector<8x32xf32> to vector<8x32xbf16>
    %cst_19 = arith.constant dense<0.000000e+00> : vector<8x128xf32>
    %27 = tpu.matmul %26, %4, %cst_19 {dimension_numbers = #tpu.dot_dimension_numbers<[1], [0], [0], [1], [0, 0, 1, 1], [], []>} : vector<8x32xbf16>, vector<32x128xbf16>, vector<8x128xf32> -> vector<8x128xf32>
    %28 = vector.broadcast %5 : vector<1x128xf32> to vector<8x128xf32>
    %29 = arith.addf %27, %28 : vector<8x128xf32>
    %c0_20 = arith.constant 0 : index
    %c0_21 = arith.constant 0 : index
    %c0_22 = arith.constant 0 : index
    %30 = vector.load %arg18[%c0_20, %c0_21, %c0_22] : memref<8x8x128xf32, #tpu.memory_space<vmem>>, vector<1x8x128xf32>
    %31 = vector.shape_cast %30 : vector<1x8x128xf32> to vector<8x128xf32>
    %32 = vector.shape_cast %29 : vector<8x128xf32> to vector<1x8x128xf32>
    tpu.vector_store %arg18[%c0_20, %c0_21, %c0_22], %32 {strides = array<i32>} : memref<8x8x128xf32, #tpu.memory_space<vmem>>, vector<1x8x128xf32>,
    %c1 = arith.constant 1 : index
    %c0_23 = arith.constant 0 : index
    %c0_24 = arith.constant 0 : index
    %33 = vector.load %arg1[%c1, %c0_23, %c0_24] : memref<8x8x8xf32, #tpu.memory_space<vmem>>, vector<1x8x8xf32>
    %34 = vector.shape_cast %33 : vector<1x8x8xf32> to vector<8x8xf32>
    %35 = arith.truncf %34 : vector<8x8xf32> to vector<8x8xbf16>
    %cst_25 = arith.constant dense<0.000000e+00> : vector<8x32xf32>
    %36 = tpu.matmul %35, %0, %cst_25 {dimension_numbers = #tpu.dot_dimension_numbers<[1], [0], [0], [1], [0, 0, 1, 1], [], []>} : vector<8x8xbf16>, vector<8x32xbf16>, vector<8x32xf32> -> vector<8x32xf32>
    %37 = vector.broadcast %1 : vector<1x32xf32> to vector<8x32xf32>
    %38 = arith.addf %36, %37 : vector<8x32xf32>
    %cst_26 = arith.constant 0.000000e+00 : f32
    %39 = vector.broadcast %cst_26 : f32 to vector<8x32xf32>
    %40 = arith.cmpf oge, %38, %39 : vector<8x32xf32>
    %cst_27 = arith.constant 0.00999999977 : f32
    %41 = vector.broadcast %cst_27 : f32 to vector<8x32xf32>
    %42 = arith.mulf %41, %38 : vector<8x32xf32>
    %43 = arith.select %40, %38, %42 : vector<8x32xi1>, vector<8x32xf32>
    %44 = arith.truncf %43 : vector<8x32xf32> to vector<8x32xbf16>
    %cst_28 = arith.constant dense<0.000000e+00> : vector<8x32xf32>
    %45 = tpu.matmul %44, %2, %cst_28 {dimension_numbers = #tpu.dot_dimension_numbers<[1], [0], [0], [1], [0, 0, 1, 1], [], []>} : vector<8x32xbf16>, vector<32x32xbf16>, vector<8x32xf32> -> vector<8x32xf32>
    %46 = vector.broadcast %3 : vector<1x32xf32> to vector<8x32xf32>
    %47 = arith.addf %45, %46 : vector<8x32xf32>
    %cst_29 = arith.constant 0.000000e+00 : f32
    %48 = vector.broadcast %cst_29 : f32 to vector<8x32xf32>
    %49 = arith.cmpf oge, %47, %48 : vector<8x32xf32>
    %cst_30 = arith.constant 0.00999999977 : f32
    %50 = vector.broadcast %cst_30 : f32 to vector<8x32xf32>
    %51 = arith.mulf %50, %47 : vector<8x32xf32>
    %52 = arith.select %49, %47, %51 : vector<8x32xi1>, vector<8x32xf32>
    %53 = arith.truncf %52 : vector<8x32xf32> to vector<8x32xbf16>
    %cst_31 = arith.constant dense<0.000000e+00> : vector<8x128xf32>
    %54 = tpu.matmul %53, %4, %cst_31 {dimension_numbers = #tpu.dot_dimension_numbers<[1], [0], [0], [1], [0, 0, 1, 1], [], []>} : vector<8x32xbf16>, vector<32x128xbf16>, vector<8x128xf32> -> vector<8x128xf32>
    %55 = vector.broadcast %5 : vector<1x128xf32> to vector<8x128xf32>
    %56 = arith.addf %54, %55 : vector<8x128xf32>
    %c1_32 = arith.constant 1 : index
    %c0_33 = arith.constant 0 : index
    %c0_34 = arith.constant 0 : index
    %57 = vector.load %arg18[%c1_32, %c0_33, %c0_34] : memref<8x8x128xf32, #tpu.memory_space<vmem>>, vector<1x8x128xf32>
    %58 = vector.shape_cast %57 : vector<1x8x128xf32> to vector<8x128xf32>
    %59 = vector.shape_cast %56 : vector<8x128xf32> to vector<1x8x128xf32>
    tpu.vector_store %arg18[%c1_32, %c0_33, %c0_34], %59 {strides = array<i32>} : memref<8x8x128xf32, #tpu.memory_space<vmem>>, vector<1x8x128xf32>,
    %c2 = arith.constant 2 : index
    %c0_35 = arith.constant 0 : index
    %c0_36 = arith.constant 0 : index
    %60 = vector.load %arg1[%c2, %c0_35, %c0_36] : memref<8x8x8xf32, #tpu.memory_space<vmem>>, vector<1x8x8xf32>
    %61 = vector.shape_cast %60 : vector<1x8x8xf32> to vector<8x8xf32>
    %62 = arith.truncf %61 : vector<8x8xf32> to vector<8x8xbf16>
    %cst_37 = arith.constant dense<0.000000e+00> : vector<8x32xf32>
    %63 = tpu.matmul %62, %0, %cst_37 {dimension_numbers = #tpu.dot_dimension_numbers<[1], [0], [0], [1], [0, 0, 1, 1], [], []>} : vector<8x8xbf16>, vector<8x32xbf16>, vector<8x32xf32> -> vector<8x32xf32>
    %64 = vector.broadcast %1 : vector<1x32xf32> to vector<8x32xf32>
    %65 = arith.addf %63, %64 : vector<8x32xf32>
    %cst_38 = arith.constant 0.000000e+00 : f32
    %66 = vector.broadcast %cst_38 : f32 to vector<8x32xf32>
    %67 = arith.cmpf oge, %65, %66 : vector<8x32xf32>
    %cst_39 = arith.constant 0.00999999977 : f32
    %68 = vector.broadcast %cst_39 : f32 to vector<8x32xf32>
    %69 = arith.mulf %68, %65 : vector<8x32xf32>
    %70 = arith.select %67, %65, %69 : vector<8x32xi1>, vector<8x32xf32>
    %71 = arith.truncf %70 : vector<8x32xf32> to vector<8x32xbf16>
    %cst_40 = arith.constant dense<0.000000e+00> : vector<8x32xf32>
    %72 = tpu.matmul %71, %2, %cst_40 {dimension_numbers = #tpu.dot_dimension_numbers<[1], [0], [0], [1], [0, 0, 1, 1], [], []>} : vector<8x32xbf16>, vector<32x32xbf16>, vector<8x32xf32> -> vector<8x32xf32>
    %73 = vector.broadcast %3 : vector<1x32xf32> to vector<8x32xf32>
    %74 = arith.addf %72, %73 : vector<8x32xf32>
    %cst_41 = arith.constant 0.000000e+00 : f32
    %75 = vector.broadcast %cst_41 : f32 to vector<8x32xf32>
    %76 = arith.cmpf oge, %74, %75 : vector<8x32xf32>
    %cst_42 = arith.constant 0.00999999977 : f32
    %77 = vector.broadcast %cst_42 : f32 to vector<8x32xf32>
    %78 = arith.mulf %77, %74 : vector<8x32xf32>
    %79 = arith.select %76, %74, %78 : vector<8x32xi1>, vector<8x32xf32>
    %80 = arith.truncf %79 : vector<8x32xf32> to vector<8x32xbf16>
    %cst_43 = arith.constant dense<0.000000e+00> : vector<8x128xf32>
    %81 = tpu.matmul %80, %4, %cst_43 {dimension_numbers = #tpu.dot_dimension_numbers<[1], [0], [0], [1], [0, 0, 1, 1], [], []>} : vector<8x32xbf16>, vector<32x128xbf16>, vector<8x128xf32> -> vector<8x128xf32>
    %82 = vector.broadcast %5 : vector<1x128xf32> to vector<8x128xf32>
    %83 = arith.addf %81, %82 : vector<8x128xf32>
    %c2_44 = arith.constant 2 : index
    %c0_45 = arith.constant 0 : index
    %c0_46 = arith.constant 0 : index
    %84 = vector.load %arg18[%c2_44, %c0_45, %c0_46] : memref<8x8x128xf32, #tpu.memory_space<vmem>>, vector<1x8x128xf32>
    %85 = vector.shape_cast %84 : vector<1x8x128xf32> to vector<8x128xf32>
    %86 = vector.shape_cast %83 : vector<8x128xf32> to vector<1x8x128xf32>
    tpu.vector_store %arg18[%c2_44, %c0_45, %c0_46], %86 {strides = array<i32>} : memref<8x8x128xf32, #tpu.memory_space<vmem>>, vector<1x8x128xf32>,
    %c3 = arith.constant 3 : index
    %c0_47 = arith.constant 0 : index
    %c0_48 = arith.constant 0 : index
    %87 = vector.load %arg1[%c3, %c0_47, %c0_48] : memref<8x8x8xf32, #tpu.memory_space<vmem>>, vector<1x8x8xf32>
    %88 = vector.shape_cast %87 : vector<1x8x8xf32> to vector<8x8xf32>
    %89 = arith.truncf %88 : vector<8x8xf32> to vector<8x8xbf16>
    %cst_49 = arith.constant dense<0.000000e+00> : vector<8x32xf32>
    %90 = tpu.matmul %89, %0, %cst_49 {dimension_numbers = #tpu.dot_dimension_numbers<[1], [0], [0], [1], [0, 0, 1, 1], [], []>} : vector<8x8xbf16>, vector<8x32xbf16>, vector<8x32xf32> -> vector<8x32xf32>
    %91 = vector.broadcast %1 : vector<1x32xf32> to vector<8x32xf32>
    %92 = arith.addf %90, %91 : vector<8x32xf32>
    %cst_50 = arith.constant 0.000000e+00 : f32
    %93 = vector.broadcast %cst_50 : f32 to vector<8x32xf32>
    %94 = arith.cmpf oge, %92, %93 : vector<8x32xf32>
    %cst_51 = arith.constant 0.00999999977 : f32
    %95 = vector.broadcast %cst_51 : f32 to vector<8x32xf32>
    %96 = arith.mulf %95, %92 : vector<8x32xf32>
    %97 = arith.select %94, %92, %96 : vector<8x32xi1>, vector<8x32xf32>
    %98 = arith.truncf %97 : vector<8x32xf32> to vector<8x32xbf16>
    %cst_52 = arith.constant dense<0.000000e+00> : vector<8x32xf32>
    %99 = tpu.matmul %98, %2, %cst_52 {dimension_numbers = #tpu.dot_dimension_numbers<[1], [0], [0], [1], [0, 0, 1, 1], [], []>} : vector<8x32xbf16>, vector<32x32xbf16>, vector<8x32xf32> -> vector<8x32xf32>
    %100 = vector.broadcast %3 : vector<1x32xf32> to vector<8x32xf32>
    %101 = arith.addf %99, %100 : vector<8x32xf32>
    %cst_53 = arith.constant 0.000000e+00 : f32
    %102 = vector.broadcast %cst_53 : f32 to vector<8x32xf32>
    %103 = arith.cmpf oge, %101, %102 : vector<8x32xf32>
    %cst_54 = arith.constant 0.00999999977 : f32
    %104 = vector.broadcast %cst_54 : f32 to vector<8x32xf32>
    %105 = arith.mulf %104, %101 : vector<8x32xf32>
    %106 = arith.select %103, %101, %105 : vector<8x32xi1>, vector<8x32xf32>
    %107 = arith.truncf %106 : vector<8x32xf32> to vector<8x32xbf16>
    %cst_55 = arith.constant dense<0.000000e+00> : vector<8x128xf32>
    %108 = tpu.matmul %107, %4, %cst_55 {dimension_numbers = #tpu.dot_dimension_numbers<[1], [0], [0], [1], [0, 0, 1, 1], [], []>} : vector<8x32xbf16>, vector<32x128xbf16>, vector<8x128xf32> -> vector<8x128xf32>
    %109 = vector.broadcast %5 : vector<1x128xf32> to vector<8x128xf32>
    %110 = arith.addf %108, %109 : vector<8x128xf32>
    %c3_56 = arith.constant 3 : index
    %c0_57 = arith.constant 0 : index
    %c0_58 = arith.constant 0 : index
    %111 = vector.load %arg18[%c3_56, %c0_57, %c0_58] : memref<8x8x128xf32, #tpu.memory_space<vmem>>, vector<1x8x128xf32>
    %112 = vector.shape_cast %111 : vector<1x8x128xf32> to vector<8x128xf32>
    %113 = vector.shape_cast %110 : vector<8x128xf32> to vector<1x8x128xf32>
    tpu.vector_store %arg18[%c3_56, %c0_57, %c0_58], %113 {strides = array<i32>} : memref<8x8x128xf32, #tpu.memory_space<vmem>>, vector<1x8x128xf32>,
    %c4 = arith.constant 4 : index
    %c0_59 = arith.constant 0 : index
    %c0_60 = arith.constant 0 : index
    %114 = vector.load %arg1[%c4, %c0_59, %c0_60] : memref<8x8x8xf32, #tpu.memory_space<vmem>>, vector<1x8x8xf32>
    %115 = vector.shape_cast %114 : vector<1x8x8xf32> to vector<8x8xf32>
    %116 = arith.truncf %115 : vector<8x8xf32> to vector<8x8xbf16>
    %cst_61 = arith.constant dense<0.000000e+00> : vector<8x32xf32>
    %117 = tpu.matmul %116, %0, %cst_61 {dimension_numbers = #tpu.dot_dimension_numbers<[1], [0], [0], [1], [0, 0, 1, 1], [], []>} : vector<8x8xbf16>, vector<8x32xbf16>, vector<8x32xf32> -> vector<8x32xf32>
    %118 = vector.broadcast %1 : vector<1x32xf32> to vector<8x32xf32>
    %119 = arith.addf %117, %118 : vector<8x32xf32>
    %cst_62 = arith.constant 0.000000e+00 : f32
    %120 = vector.broadcast %cst_62 : f32 to vector<8x32xf32>
    %121 = arith.cmpf oge, %119, %120 : vector<8x32xf32>
    %cst_63 = arith.constant 0.00999999977 : f32
    %122 = vector.broadcast %cst_63 : f32 to vector<8x32xf32>
    %123 = arith.mulf %122, %119 : vector<8x32xf32>
    %124 = arith.select %121, %119, %123 : vector<8x32xi1>, vector<8x32xf32>
    %125 = arith.truncf %124 : vector<8x32xf32> to vector<8x32xbf16>
    %cst_64 = arith.constant dense<0.000000e+00> : vector<8x32xf32>
    %126 = tpu.matmul %125, %2, %cst_64 {dimension_numbers = #tpu.dot_dimension_numbers<[1], [0], [0], [1], [0, 0, 1, 1], [], []>} : vector<8x32xbf16>, vector<32x32xbf16>, vector<8x32xf32> -> vector<8x32xf32>
    %127 = vector.broadcast %3 : vector<1x32xf32> to vector<8x32xf32>
    %128 = arith.addf %126, %127 : vector<8x32xf32>
    %cst_65 = arith.constant 0.000000e+00 : f32
    %129 = vector.broadcast %cst_65 : f32 to vector<8x32xf32>
    %130 = arith.cmpf oge, %128, %129 : vector<8x32xf32>
    %cst_66 = arith.constant 0.00999999977 : f32
    %131 = vector.broadcast %cst_66 : f32 to vector<8x32xf32>
    %132 = arith.mulf %131, %128 : vector<8x32xf32>
    %133 = arith.select %130, %128, %132 : vector<8x32xi1>, vector<8x32xf32>
    %134 = arith.truncf %133 : vector<8x32xf32> to vector<8x32xbf16>
    %cst_67 = arith.constant dense<0.000000e+00> : vector<8x128xf32>
    %135 = tpu.matmul %134, %4, %cst_67 {dimension_numbers = #tpu.dot_dimension_numbers<[1], [0], [0], [1], [0, 0, 1, 1], [], []>} : vector<8x32xbf16>, vector<32x128xbf16>, vector<8x128xf32> -> vector<8x128xf32>
    %136 = vector.broadcast %5 : vector<1x128xf32> to vector<8x128xf32>
    %137 = arith.addf %135, %136 : vector<8x128xf32>
    %c4_68 = arith.constant 4 : index
    %c0_69 = arith.constant 0 : index
    %c0_70 = arith.constant 0 : index
    %138 = vector.load %arg18[%c4_68, %c0_69, %c0_70] : memref<8x8x128xf32, #tpu.memory_space<vmem>>, vector<1x8x128xf32>
    %139 = vector.shape_cast %138 : vector<1x8x128xf32> to vector<8x128xf32>
    %140 = vector.shape_cast %137 : vector<8x128xf32> to vector<1x8x128xf32>
    tpu.vector_store %arg18[%c4_68, %c0_69, %c0_70], %140 {strides = array<i32>} : memref<8x8x128xf32, #tpu.memory_space<vmem>>, vector<1x8x128xf32>,
    %c5 = arith.constant 5 : index
    %c0_71 = arith.constant 0 : index
    %c0_72 = arith.constant 0 : index
    %141 = vector.load %arg1[%c5, %c0_71, %c0_72] : memref<8x8x8xf32, #tpu.memory_space<vmem>>, vector<1x8x8xf32>
    %142 = vector.shape_cast %141 : vector<1x8x8xf32> to vector<8x8xf32>
    %143 = arith.truncf %142 : vector<8x8xf32> to vector<8x8xbf16>
    %cst_73 = arith.constant dense<0.000000e+00> : vector<8x32xf32>
    %144 = tpu.matmul %143, %0, %cst_73 {dimension_numbers = #tpu.dot_dimension_numbers<[1], [0], [0], [1], [0, 0, 1, 1], [], []>} : vector<8x8xbf16>, vector<8x32xbf16>, vector<8x32xf32> -> vector<8x32xf32>
    %145 = vector.broadcast %1 : vector<1x32xf32> to vector<8x32xf32>
    %146 = arith.addf %144, %145 : vector<8x32xf32>
    %cst_74 = arith.constant 0.000000e+00 : f32
    %147 = vector.broadcast %cst_74 : f32 to vector<8x32xf32>
    %148 = arith.cmpf oge, %146, %147 : vector<8x32xf32>
    %cst_75 = arith.constant 0.00999999977 : f32
    %149 = vector.broadcast %cst_75 : f32 to vector<8x32xf32>
    %150 = arith.mulf %149, %146 : vector<8x32xf32>
    %151 = arith.select %148, %146, %150 : vector<8x32xi1>, vector<8x32xf32>
    %152 = arith.truncf %151 : vector<8x32xf32> to vector<8x32xbf16>
    %cst_76 = arith.constant dense<0.000000e+00> : vector<8x32xf32>
    %153 = tpu.matmul %152, %2, %cst_76 {dimension_numbers = #tpu.dot_dimension_numbers<[1], [0], [0], [1], [0, 0, 1, 1], [], []>} : vector<8x32xbf16>, vector<32x32xbf16>, vector<8x32xf32> -> vector<8x32xf32>
    %154 = vector.broadcast %3 : vector<1x32xf32> to vector<8x32xf32>
    %155 = arith.addf %153, %154 : vector<8x32xf32>
    %cst_77 = arith.constant 0.000000e+00 : f32
    %156 = vector.broadcast %cst_77 : f32 to vector<8x32xf32>
    %157 = arith.cmpf oge, %155, %156 : vector<8x32xf32>
    %cst_78 = arith.constant 0.00999999977 : f32
    %158 = vector.broadcast %cst_78 : f32 to vector<8x32xf32>
    %159 = arith.mulf %158, %155 : vector<8x32xf32>
    %160 = arith.select %157, %155, %159 : vector<8x32xi1>, vector<8x32xf32>
    %161 = arith.truncf %160 : vector<8x32xf32> to vector<8x32xbf16>
    %cst_79 = arith.constant dense<0.000000e+00> : vector<8x128xf32>
    %162 = tpu.matmul %161, %4, %cst_79 {dimension_numbers = #tpu.dot_dimension_numbers<[1], [0], [0], [1], [0, 0, 1, 1], [], []>} : vector<8x32xbf16>, vector<32x128xbf16>, vector<8x128xf32> -> vector<8x128xf32>
    %163 = vector.broadcast %5 : vector<1x128xf32> to vector<8x128xf32>
    %164 = arith.addf %162, %163 : vector<8x128xf32>
    %c5_80 = arith.constant 5 : index
    %c0_81 = arith.constant 0 : index
    %c0_82 = arith.constant 0 : index
    %165 = vector.load %arg18[%c5_80, %c0_81, %c0_82] : memref<8x8x128xf32, #tpu.memory_space<vmem>>, vector<1x8x128xf32>
    %166 = vector.shape_cast %165 : vector<1x8x128xf32> to vector<8x128xf32>
    %167 = vector.shape_cast %164 : vector<8x128xf32> to vector<1x8x128xf32>
    tpu.vector_store %arg18[%c5_80, %c0_81, %c0_82], %167 {strides = array<i32>} : memref<8x8x128xf32, #tpu.memory_space<vmem>>, vector<1x8x128xf32>,
    %c6 = arith.constant 6 : index
    %c0_83 = arith.constant 0 : index
    %c0_84 = arith.constant 0 : index
    %168 = vector.load %arg1[%c6, %c0_83, %c0_84] : memref<8x8x8xf32, #tpu.memory_space<vmem>>, vector<1x8x8xf32>
    %169 = vector.shape_cast %168 : vector<1x8x8xf32> to vector<8x8xf32>
    %170 = arith.truncf %169 : vector<8x8xf32> to vector<8x8xbf16>
    %cst_85 = arith.constant dense<0.000000e+00> : vector<8x32xf32>
    %171 = tpu.matmul %170, %0, %cst_85 {dimension_numbers = #tpu.dot_dimension_numbers<[1], [0], [0], [1], [0, 0, 1, 1], [], []>} : vector<8x8xbf16>, vector<8x32xbf16>, vector<8x32xf32> -> vector<8x32xf32>
    %172 = vector.broadcast %1 : vector<1x32xf32> to vector<8x32xf32>
    %173 = arith.addf %171, %172 : vector<8x32xf32>
    %cst_86 = arith.constant 0.000000e+00 : f32
    %174 = vector.broadcast %cst_86 : f32 to vector<8x32xf32>
    %175 = arith.cmpf oge, %173, %174 : vector<8x32xf32>
    %cst_87 = arith.constant 0.00999999977 : f32
    %176 = vector.broadcast %cst_87 : f32 to vector<8x32xf32>
    %177 = arith.mulf %176, %173 : vector<8x32xf32>
    %178 = arith.select %175, %173, %177 : vector<8x32xi1>, vector<8x32xf32>
    %179 = arith.truncf %178 : vector<8x32xf32> to vector<8x32xbf16>
    %cst_88 = arith.constant dense<0.000000e+00> : vector<8x32xf32>
    %180 = tpu.matmul %179, %2, %cst_88 {dimension_numbers = #tpu.dot_dimension_numbers<[1], [0], [0], [1], [0, 0, 1, 1], [], []>} : vector<8x32xbf16>, vector<32x32xbf16>, vector<8x32xf32> -> vector<8x32xf32>
    %181 = vector.broadcast %3 : vector<1x32xf32> to vector<8x32xf32>
    %182 = arith.addf %180, %181 : vector<8x32xf32>
    %cst_89 = arith.constant 0.000000e+00 : f32
    %183 = vector.broadcast %cst_89 : f32 to vector<8x32xf32>
    %184 = arith.cmpf oge, %182, %183 : vector<8x32xf32>
    %cst_90 = arith.constant 0.00999999977 : f32
    %185 = vector.broadcast %cst_90 : f32 to vector<8x32xf32>
    %186 = arith.mulf %185, %182 : vector<8x32xf32>
    %187 = arith.select %184, %182, %186 : vector<8x32xi1>, vector<8x32xf32>
    %188 = arith.truncf %187 : vector<8x32xf32> to vector<8x32xbf16>
    %cst_91 = arith.constant dense<0.000000e+00> : vector<8x128xf32>
    %189 = tpu.matmul %188, %4, %cst_91 {dimension_numbers = #tpu.dot_dimension_numbers<[1], [0], [0], [1], [0, 0, 1, 1], [], []>} : vector<8x32xbf16>, vector<32x128xbf16>, vector<8x128xf32> -> vector<8x128xf32>
    %190 = vector.broadcast %5 : vector<1x128xf32> to vector<8x128xf32>
    %191 = arith.addf %189, %190 : vector<8x128xf32>
    %c6_92 = arith.constant 6 : index
    %c0_93 = arith.constant 0 : index
    %c0_94 = arith.constant 0 : index
    %192 = vector.load %arg18[%c6_92, %c0_93, %c0_94] : memref<8x8x128xf32, #tpu.memory_space<vmem>>, vector<1x8x128xf32>
    %193 = vector.shape_cast %192 : vector<1x8x128xf32> to vector<8x128xf32>
    %194 = vector.shape_cast %191 : vector<8x128xf32> to vector<1x8x128xf32>
    tpu.vector_store %arg18[%c6_92, %c0_93, %c0_94], %194 {strides = array<i32>} : memref<8x8x128xf32, #tpu.memory_space<vmem>>, vector<1x8x128xf32>,
    %c7 = arith.constant 7 : index
    %c0_95 = arith.constant 0 : index
    %c0_96 = arith.constant 0 : index
    %195 = vector.load %arg1[%c7, %c0_95, %c0_96] : memref<8x8x8xf32, #tpu.memory_space<vmem>>, vector<1x8x8xf32>
    %196 = vector.shape_cast %195 : vector<1x8x8xf32> to vector<8x8xf32>
    %197 = arith.truncf %196 : vector<8x8xf32> to vector<8x8xbf16>
    %cst_97 = arith.constant dense<0.000000e+00> : vector<8x32xf32>
    %198 = tpu.matmul %197, %0, %cst_97 {dimension_numbers = #tpu.dot_dimension_numbers<[1], [0], [0], [1], [0, 0, 1, 1], [], []>} : vector<8x8xbf16>, vector<8x32xbf16>, vector<8x32xf32> -> vector<8x32xf32>
    %199 = vector.broadcast %1 : vector<1x32xf32> to vector<8x32xf32>
    %200 = arith.addf %198, %199 : vector<8x32xf32>
    %cst_98 = arith.constant 0.000000e+00 : f32
    %201 = vector.broadcast %cst_98 : f32 to vector<8x32xf32>
    %202 = arith.cmpf oge, %200, %201 : vector<8x32xf32>
    %cst_99 = arith.constant 0.00999999977 : f32
    %203 = vector.broadcast %cst_99 : f32 to vector<8x32xf32>
    %204 = arith.mulf %203, %200 : vector<8x32xf32>
    %205 = arith.select %202, %200, %204 : vector<8x32xi1>, vector<8x32xf32>
    %206 = arith.truncf %205 : vector<8x32xf32> to vector<8x32xbf16>
    %cst_100 = arith.constant dense<0.000000e+00> : vector<8x32xf32>
    %207 = tpu.matmul %206, %2, %cst_100 {dimension_numbers = #tpu.dot_dimension_numbers<[1], [0], [0], [1], [0, 0, 1, 1], [], []>} : vector<8x32xbf16>, vector<32x32xbf16>, vector<8x32xf32> -> vector<8x32xf32>
    %208 = vector.broadcast %3 : vector<1x32xf32> to vector<8x32xf32>
    %209 = arith.addf %207, %208 : vector<8x32xf32>
    %cst_101 = arith.constant 0.000000e+00 : f32
    %210 = vector.broadcast %cst_101 : f32 to vector<8x32xf32>
    %211 = arith.cmpf oge, %209, %210 : vector<8x32xf32>
    %cst_102 = arith.constant 0.00999999977 : f32
    %212 = vector.broadcast %cst_102 : f32 to vector<8x32xf32>
    %213 = arith.mulf %212, %209 : vector<8x32xf32>
    %214 = arith.select %211, %209, %213 : vector<8x32xi1>, vector<8x32xf32>
    %215 = arith.truncf %214 : vector<8x32xf32> to vector<8x32xbf16>
    %cst_103 = arith.constant dense<0.000000e+00> : vector<8x128xf32>
    %216 = tpu.matmul %215, %4, %cst_103 {dimension_numbers = #tpu.dot_dimension_numbers<[1], [0], [0], [1], [0, 0, 1, 1], [], []>} : vector<8x32xbf16>, vector<32x128xbf16>, vector<8x128xf32> -> vector<8x128xf32>
    %217 = vector.broadcast %5 : vector<1x128xf32> to vector<8x128xf32>
    %218 = arith.addf %216, %217 : vector<8x128xf32>
    %c7_104 = arith.constant 7 : index
    %c0_105 = arith.constant 0 : index
    %c0_106 = arith.constant 0 : index
    %219 = vector.load %arg18[%c7_104, %c0_105, %c0_106] : memref<8x8x128xf32, #tpu.memory_space<vmem>>, vector<1x8x128xf32>
    %220 = vector.shape_cast %219 : vector<1x8x128xf32> to vector<8x128xf32>
    %221 = vector.shape_cast %218 : vector<8x128xf32> to vector<1x8x128xf32>
    tpu.vector_store %arg18[%c7_104, %c0_105, %c0_106], %221 {strides = array<i32>} : memref<8x8x128xf32, #tpu.memory_space<vmem>>, vector<1x8x128xf32>,
    %c0_107 = arith.constant 0 : index
    %c0_108 = arith.constant 0 : index
    %222 = vector.load %arg8[%c0_107, %c0_108] : memref<32x128xf32, #tpu.memory_space<vmem>>, vector<32x128xf32>
    %cst_109 = arith.constant 0.000000e+00 : f32
    %223 = vector.broadcast %cst_109 : f32 to vector<8x128xf32>
    %c0_110 = arith.constant 0 : index
    %c0_111 = arith.constant 0 : index
    %224 = vector.load %arg19[%c0_110, %c0_111] : memref<8x128xf32, #tpu.memory_space<vmem>>, vector<8x128xf32>
    tpu.vector_store %arg19[%c0_110, %c0_111], %223 {strides = array<i32>} : memref<8x128xf32, #tpu.memory_space<vmem>>, vector<8x128xf32>,
    %cst_112 = arith.constant 0.000000e+00 : f32
    %225 = vector.broadcast %cst_112 : f32 to vector<8x32xf32>
    %cst_113 = arith.constant 0.000000e+00 : f32
    %226 = vector.broadcast %cst_113 : f32 to vector<8x32xf32>
    %c0_114 = arith.constant 0 : index
    %c0_115 = arith.constant 0 : index
    %c0_116 = arith.constant 0 : index
    %227 = vector.load %arg18[%c0_114, %c0_115, %c0_116] : memref<8x8x128xf32, #tpu.memory_space<vmem>>, vector<1x8x128xf32>
    %228 = vector.shape_cast %227 : vector<1x8x128xf32> to vector<8x128xf32>
    %cst_117 = arith.constant dense<0.000000e+00> : vector<8x128xf32>
    %229 = tpu.matmul %225, %222, %cst_117 {dimension_numbers = #tpu.dot_dimension_numbers<[1], [0], [0], [1], [0, 0, 1, 1], [], []>} : vector<8x32xf32>, vector<32x128xf32>, vector<8x128xf32> -> vector<8x128xf32>
    %230 = arith.addf %228, %229 : vector<8x128xf32>
    %231 = math.tanh %230 : vector<8x128xf32>
    %232 = vector.extract_strided_slice %231 {offsets = [0, 0], sizes = [8, 32], strides = [1, 1]} : vector<8x128xf32> to vector<8x32xf32>
    %233 = vector.extract_strided_slice %231 {offsets = [0, 32], sizes = [8, 32], strides = [1, 1]} : vector<8x128xf32> to vector<8x32xf32>
    %234 = vector.extract_strided_slice %231 {offsets = [0, 64], sizes = [8, 32], strides = [1, 1]} : vector<8x128xf32> to vector<8x32xf32>
    %235 = vector.extract_strided_slice %231 {offsets = [0, 96], sizes = [8, 32], strides = [1, 1]} : vector<8x128xf32> to vector<8x32xf32>
    %cst_118 = arith.constant 1.000000e+00 : f32
    %236 = vector.broadcast %cst_118 : f32 to vector<8x32xf32>
    %237 = arith.addf %233, %236 : vector<8x32xf32>
    %238 = arith.mulf %237, %226 : vector<8x32xf32>
    %cst_119 = arith.constant 1.000000e+00 : f32
    %239 = vector.broadcast %cst_119 : f32 to vector<8x32xf32>
    %240 = arith.addf %232, %239 : vector<8x32xf32>
    %241 = arith.mulf %240, %234 : vector<8x32xf32>
    %242 = arith.addf %238, %241 : vector<8x32xf32>
    %cst_120 = arith.constant 5.000000e-01 : f32
    %243 = vector.broadcast %cst_120 : f32 to vector<8x32xf32>
    %244 = arith.mulf %243, %242 : vector<8x32xf32>
    %cst_121 = arith.constant 1.000000e+00 : f32
    %245 = vector.broadcast %cst_121 : f32 to vector<8x32xf32>
    %246 = arith.addf %235, %245 : vector<8x32xf32>
    %cst_122 = arith.constant 5.000000e-01 : f32
    %247 = vector.broadcast %cst_122 : f32 to vector<8x32xf32>
    %248 = arith.mulf %247, %246 : vector<8x32xf32>
    %249 = math.tanh %244 : vector<8x32xf32>
    %250 = arith.mulf %248, %249 : vector<8x32xf32>
    %c0_123 = arith.constant 0 : index
    %c0_124 = arith.constant 0 : index
    %251 = vector.load %arg19[%c0_123, %c0_124] : memref<8x128xf32, #tpu.memory_space<vmem>>, vector<8x128xf32>
    %252 = arith.truncf %250 : vector<8x32xf32> to vector<8x32xbf16>
    %c0_125 = arith.constant 0 : index
    %c0_126 = arith.constant 0 : index
    %253 = vector.load %arg9[%c0_125, %c0_126] : memref<256x128xbf16, #tpu.memory_space<vmem>>, vector<32x128xbf16>
    %cst_127 = arith.constant dense<0.000000e+00> : vector<8x128xf32>
    %254 = tpu.matmul %252, %253, %cst_127 {dimension_numbers = #tpu.dot_dimension_numbers<[1], [0], [0], [1], [0, 0, 1, 1], [], []>} : vector<8x32xbf16>, vector<32x128xbf16>, vector<8x128xf32> -> vector<8x128xf32>
    %255 = arith.addf %251, %254 : vector<8x128xf32>
    %c0_128 = arith.constant 0 : index
    %c0_129 = arith.constant 0 : index
    %256 = vector.load %arg19[%c0_128, %c0_129] : memref<8x128xf32, #tpu.memory_space<vmem>>, vector<8x128xf32>
    tpu.vector_store %arg19[%c0_128, %c0_129], %255 {strides = array<i32>} : memref<8x128xf32, #tpu.memory_space<vmem>>, vector<8x128xf32>,
    %c1_130 = arith.constant 1 : index
    %c0_131 = arith.constant 0 : index
    %c0_132 = arith.constant 0 : index
    %257 = vector.load %arg18[%c1_130, %c0_131, %c0_132] : memref<8x8x128xf32, #tpu.memory_space<vmem>>, vector<1x8x128xf32>
    %258 = vector.shape_cast %257 : vector<1x8x128xf32> to vector<8x128xf32>
    %cst_133 = arith.constant dense<0.000000e+00> : vector<8x128xf32>
    %259 = tpu.matmul %250, %222, %cst_133 {dimension_numbers = #tpu.dot_dimension_numbers<[1], [0], [0], [1], [0, 0, 1, 1], [], []>} : vector<8x32xf32>, vector<32x128xf32>, vector<8x128xf32> -> vector<8x128xf32>
    %260 = arith.addf %258, %259 : vector<8x128xf32>
    %261 = math.tanh %260 : vector<8x128xf32>
    %262 = vector.extract_strided_slice %261 {offsets = [0, 0], sizes = [8, 32], strides = [1, 1]} : vector<8x128xf32> to vector<8x32xf32>
    %263 = vector.extract_strided_slice %261 {offsets = [0, 32], sizes = [8, 32], strides = [1, 1]} : vector<8x128xf32> to vector<8x32xf32>
    %264 = vector.extract_strided_slice %261 {offsets = [0, 64], sizes = [8, 32], strides = [1, 1]} : vector<8x128xf32> to vector<8x32xf32>
    %265 = vector.extract_strided_slice %261 {offsets = [0, 96], sizes = [8, 32], strides = [1, 1]} : vector<8x128xf32> to vector<8x32xf32>
    %cst_134 = arith.constant 1.000000e+00 : f32
    %266 = vector.broadcast %cst_134 : f32 to vector<8x32xf32>
    %267 = arith.addf %263, %266 : vector<8x32xf32>
    %268 = arith.mulf %267, %244 : vector<8x32xf32>
    %cst_135 = arith.constant 1.000000e+00 : f32
    %269 = vector.broadcast %cst_135 : f32 to vector<8x32xf32>
    %270 = arith.addf %262, %269 : vector<8x32xf32>
    %271 = arith.mulf %270, %264 : vector<8x32xf32>
    %272 = arith.addf %268, %271 : vector<8x32xf32>
    %cst_136 = arith.constant 5.000000e-01 : f32
    %273 = vector.broadcast %cst_136 : f32 to vector<8x32xf32>
    %274 = arith.mulf %273, %272 : vector<8x32xf32>
    %cst_137 = arith.constant 1.000000e+00 : f32
    %275 = vector.broadcast %cst_137 : f32 to vector<8x32xf32>
    %276 = arith.addf %265, %275 : vector<8x32xf32>
    %cst_138 = arith.constant 5.000000e-01 : f32
    %277 = vector.broadcast %cst_138 : f32 to vector<8x32xf32>
    %278 = arith.mulf %277, %276 : vector<8x32xf32>
    %279 = math.tanh %274 : vector<8x32xf32>
    %280 = arith.mulf %278, %279 : vector<8x32xf32>
    %c0_139 = arith.constant 0 : index
    %c0_140 = arith.constant 0 : index
    %281 = vector.load %arg19[%c0_139, %c0_140] : memref<8x128xf32, #tpu.memory_space<vmem>>, vector<8x128xf32>
    %282 = arith.truncf %280 : vector<8x32xf32> to vector<8x32xbf16>
    %c32 = arith.constant 32 : index
    %c0_141 = arith.constant 0 : index
    %283 = vector.load %arg9[%c32, %c0_141] : memref<256x128xbf16, #tpu.memory_space<vmem>>, vector<32x128xbf16>
    %cst_142 = arith.constant dense<0.000000e+00> : vector<8x128xf32>
    %284 = tpu.matmul %282, %283, %cst_142 {dimension_numbers = #tpu.dot_dimension_numbers<[1], [0], [0], [1], [0, 0, 1, 1], [], []>} : vector<8x32xbf16>, vector<32x128xbf16>, vector<8x128xf32> -> vector<8x128xf32>
    %285 = arith.addf %281, %284 : vector<8x128xf32>
    %c0_143 = arith.constant 0 : index
    %c0_144 = arith.constant 0 : index
    %286 = vector.load %arg19[%c0_143, %c0_144] : memref<8x128xf32, #tpu.memory_space<vmem>>, vector<8x128xf32>
    tpu.vector_store %arg19[%c0_143, %c0_144], %285 {strides = array<i32>} : memref<8x128xf32, #tpu.memory_space<vmem>>, vector<8x128xf32>,
    %c2_145 = arith.constant 2 : index
    %c0_146 = arith.constant 0 : index
    %c0_147 = arith.constant 0 : index
    %287 = vector.load %arg18[%c2_145, %c0_146, %c0_147] : memref<8x8x128xf32, #tpu.memory_space<vmem>>, vector<1x8x128xf32>
    %288 = vector.shape_cast %287 : vector<1x8x128xf32> to vector<8x128xf32>
    %cst_148 = arith.constant dense<0.000000e+00> : vector<8x128xf32>
    %289 = tpu.matmul %280, %222, %cst_148 {dimension_numbers = #tpu.dot_dimension_numbers<[1], [0], [0], [1], [0, 0, 1, 1], [], []>} : vector<8x32xf32>, vector<32x128xf32>, vector<8x128xf32> -> vector<8x128xf32>
    %290 = arith.addf %288, %289 : vector<8x128xf32>
    %291 = math.tanh %290 : vector<8x128xf32>
    %292 = vector.extract_strided_slice %291 {offsets = [0, 0], sizes = [8, 32], strides = [1, 1]} : vector<8x128xf32> to vector<8x32xf32>
    %293 = vector.extract_strided_slice %291 {offsets = [0, 32], sizes = [8, 32], strides = [1, 1]} : vector<8x128xf32> to vector<8x32xf32>
    %294 = vector.extract_strided_slice %291 {offsets = [0, 64], sizes = [8, 32], strides = [1, 1]} : vector<8x128xf32> to vector<8x32xf32>
    %295 = vector.extract_strided_slice %291 {offsets = [0, 96], sizes = [8, 32], strides = [1, 1]} : vector<8x128xf32> to vector<8x32xf32>
    %cst_149 = arith.constant 1.000000e+00 : f32
    %296 = vector.broadcast %cst_149 : f32 to vector<8x32xf32>
    %297 = arith.addf %293, %296 : vector<8x32xf32>
    %298 = arith.mulf %297, %274 : vector<8x32xf32>
    %cst_150 = arith.constant 1.000000e+00 : f32
    %299 = vector.broadcast %cst_150 : f32 to vector<8x32xf32>
    %300 = arith.addf %292, %299 : vector<8x32xf32>
    %301 = arith.mulf %300, %294 : vector<8x32xf32>
    %302 = arith.addf %298, %301 : vector<8x32xf32>
    %cst_151 = arith.constant 5.000000e-01 : f32
    %303 = vector.broadcast %cst_151 : f32 to vector<8x32xf32>
    %304 = arith.mulf %303, %302 : vector<8x32xf32>
    %cst_152 = arith.constant 1.000000e+00 : f32
    %305 = vector.broadcast %cst_152 : f32 to vector<8x32xf32>
    %306 = arith.addf %295, %305 : vector<8x32xf32>
    %cst_153 = arith.constant 5.000000e-01 : f32
    %307 = vector.broadcast %cst_153 : f32 to vector<8x32xf32>
    %308 = arith.mulf %307, %306 : vector<8x32xf32>
    %309 = math.tanh %304 : vector<8x32xf32>
    %310 = arith.mulf %308, %309 : vector<8x32xf32>
    %c0_154 = arith.constant 0 : index
    %c0_155 = arith.constant 0 : index
    %311 = vector.load %arg19[%c0_154, %c0_155] : memref<8x128xf32, #tpu.memory_space<vmem>>, vector<8x128xf32>
    %312 = arith.truncf %310 : vector<8x32xf32> to vector<8x32xbf16>
    %c64 = arith.constant 64 : index
    %c0_156 = arith.constant 0 : index
    %313 = vector.load %arg9[%c64, %c0_156] : memref<256x128xbf16, #tpu.memory_space<vmem>>, vector<32x128xbf16>
    %cst_157 = arith.constant dense<0.000000e+00> : vector<8x128xf32>
    %314 = tpu.matmul %312, %313, %cst_157 {dimension_numbers = #tpu.dot_dimension_numbers<[1], [0], [0], [1], [0, 0, 1, 1], [], []>} : vector<8x32xbf16>, vector<32x128xbf16>, vector<8x128xf32> -> vector<8x128xf32>
    %315 = arith.addf %311, %314 : vector<8x128xf32>
    %c0_158 = arith.constant 0 : index
    %c0_159 = arith.constant 0 : index
    %316 = vector.load %arg19[%c0_158, %c0_159] : memref<8x128xf32, #tpu.memory_space<vmem>>, vector<8x128xf32>
    tpu.vector_store %arg19[%c0_158, %c0_159], %315 {strides = array<i32>} : memref<8x128xf32, #tpu.memory_space<vmem>>, vector<8x128xf32>,
    %c3_160 = arith.constant 3 : index
    %c0_161 = arith.constant 0 : index
    %c0_162 = arith.constant 0 : index
    %317 = vector.load %arg18[%c3_160, %c0_161, %c0_162] : memref<8x8x128xf32, #tpu.memory_space<vmem>>, vector<1x8x128xf32>
    %318 = vector.shape_cast %317 : vector<1x8x128xf32> to vector<8x128xf32>
    %cst_163 = arith.constant dense<0.000000e+00> : vector<8x128xf32>
    %319 = tpu.matmul %310, %222, %cst_163 {dimension_numbers = #tpu.dot_dimension_numbers<[1], [0], [0], [1], [0, 0, 1, 1], [], []>} : vector<8x32xf32>, vector<32x128xf32>, vector<8x128xf32> -> vector<8x128xf32>
    %320 = arith.addf %318, %319 : vector<8x128xf32>
    %321 = math.tanh %320 : vector<8x128xf32>
    %322 = vector.extract_strided_slice %321 {offsets = [0, 0], sizes = [8, 32], strides = [1, 1]} : vector<8x128xf32> to vector<8x32xf32>
    %323 = vector.extract_strided_slice %321 {offsets = [0, 32], sizes = [8, 32], strides = [1, 1]} : vector<8x128xf32> to vector<8x32xf32>
    %324 = vector.extract_strided_slice %321 {offsets = [0, 64], sizes = [8, 32], strides = [1, 1]} : vector<8x128xf32> to vector<8x32xf32>
    %325 = vector.extract_strided_slice %321 {offsets = [0, 96], sizes = [8, 32], strides = [1, 1]} : vector<8x128xf32> to vector<8x32xf32>
    %cst_164 = arith.constant 1.000000e+00 : f32
    %326 = vector.broadcast %cst_164 : f32 to vector<8x32xf32>
    %327 = arith.addf %323, %326 : vector<8x32xf32>
    %328 = arith.mulf %327, %304 : vector<8x32xf32>
    %cst_165 = arith.constant 1.000000e+00 : f32
    %329 = vector.broadcast %cst_165 : f32 to vector<8x32xf32>
    %330 = arith.addf %322, %329 : vector<8x32xf32>
    %331 = arith.mulf %330, %324 : vector<8x32xf32>
    %332 = arith.addf %328, %331 : vector<8x32xf32>
    %cst_166 = arith.constant 5.000000e-01 : f32
    %333 = vector.broadcast %cst_166 : f32 to vector<8x32xf32>
    %334 = arith.mulf %333, %332 : vector<8x32xf32>
    %cst_167 = arith.constant 1.000000e+00 : f32
    %335 = vector.broadcast %cst_167 : f32 to vector<8x32xf32>
    %336 = arith.addf %325, %335 : vector<8x32xf32>
    %cst_168 = arith.constant 5.000000e-01 : f32
    %337 = vector.broadcast %cst_168 : f32 to vector<8x32xf32>
    %338 = arith.mulf %337, %336 : vector<8x32xf32>
    %339 = math.tanh %334 : vector<8x32xf32>
    %340 = arith.mulf %338, %339 : vector<8x32xf32>
    %c0_169 = arith.constant 0 : index
    %c0_170 = arith.constant 0 : index
    %341 = vector.load %arg19[%c0_169, %c0_170] : memref<8x128xf32, #tpu.memory_space<vmem>>, vector<8x128xf32>
    %342 = arith.truncf %340 : vector<8x32xf32> to vector<8x32xbf16>
    %c96 = arith.constant 96 : index
    %c0_171 = arith.constant 0 : index
    %343 = vector.load %arg9[%c96, %c0_171] : memref<256x128xbf16, #tpu.memory_space<vmem>>, vector<32x128xbf16>
    %cst_172 = arith.constant dense<0.000000e+00> : vector<8x128xf32>
    %344 = tpu.matmul %342, %343, %cst_172 {dimension_numbers = #tpu.dot_dimension_numbers<[1], [0], [0], [1], [0, 0, 1, 1], [], []>} : vector<8x32xbf16>, vector<32x128xbf16>, vector<8x128xf32> -> vector<8x128xf32>
    %345 = arith.addf %341, %344 : vector<8x128xf32>
    %c0_173 = arith.constant 0 : index
    %c0_174 = arith.constant 0 : index
    %346 = vector.load %arg19[%c0_173, %c0_174] : memref<8x128xf32, #tpu.memory_space<vmem>>, vector<8x128xf32>
    tpu.vector_store %arg19[%c0_173, %c0_174], %345 {strides = array<i32>} : memref<8x128xf32, #tpu.memory_space<vmem>>, vector<8x128xf32>,
    %c4_175 = arith.constant 4 : index
    %c0_176 = arith.constant 0 : index
    %c0_177 = arith.constant 0 : index
    %347 = vector.load %arg18[%c4_175, %c0_176, %c0_177] : memref<8x8x128xf32, #tpu.memory_space<vmem>>, vector<1x8x128xf32>
    %348 = vector.shape_cast %347 : vector<1x8x128xf32> to vector<8x128xf32>
    %cst_178 = arith.constant dense<0.000000e+00> : vector<8x128xf32>
    %349 = tpu.matmul %340, %222, %cst_178 {dimension_numbers = #tpu.dot_dimension_numbers<[1], [0], [0], [1], [0, 0, 1, 1], [], []>} : vector<8x32xf32>, vector<32x128xf32>, vector<8x128xf32> -> vector<8x128xf32>
    %350 = arith.addf %348, %349 : vector<8x128xf32>
    %351 = math.tanh %350 : vector<8x128xf32>
    %352 = vector.extract_strided_slice %351 {offsets = [0, 0], sizes = [8, 32], strides = [1, 1]} : vector<8x128xf32> to vector<8x32xf32>
    %353 = vector.extract_strided_slice %351 {offsets = [0, 32], sizes = [8, 32], strides = [1, 1]} : vector<8x128xf32> to vector<8x32xf32>
    %354 = vector.extract_strided_slice %351 {offsets = [0, 64], sizes = [8, 32], strides = [1, 1]} : vector<8x128xf32> to vector<8x32xf32>
    %355 = vector.extract_strided_slice %351 {offsets = [0, 96], sizes = [8, 32], strides = [1, 1]} : vector<8x128xf32> to vector<8x32xf32>
    %cst_179 = arith.constant 1.000000e+00 : f32
    %356 = vector.broadcast %cst_179 : f32 to vector<8x32xf32>
    %357 = arith.addf %353, %356 : vector<8x32xf32>
    %358 = arith.mulf %357, %334 : vector<8x32xf32>
    %cst_180 = arith.constant 1.000000e+00 : f32
    %359 = vector.broadcast %cst_180 : f32 to vector<8x32xf32>
    %360 = arith.addf %352, %359 : vector<8x32xf32>
    %361 = arith.mulf %360, %354 : vector<8x32xf32>
    %362 = arith.addf %358, %361 : vector<8x32xf32>
    %cst_181 = arith.constant 5.000000e-01 : f32
    %363 = vector.broadcast %cst_181 : f32 to vector<8x32xf32>
    %364 = arith.mulf %363, %362 : vector<8x32xf32>
    %cst_182 = arith.constant 1.000000e+00 : f32
    %365 = vector.broadcast %cst_182 : f32 to vector<8x32xf32>
    %366 = arith.addf %355, %365 : vector<8x32xf32>
    %cst_183 = arith.constant 5.000000e-01 : f32
    %367 = vector.broadcast %cst_183 : f32 to vector<8x32xf32>
    %368 = arith.mulf %367, %366 : vector<8x32xf32>
    %369 = math.tanh %364 : vector<8x32xf32>
    %370 = arith.mulf %368, %369 : vector<8x32xf32>
    %c0_184 = arith.constant 0 : index
    %c0_185 = arith.constant 0 : index
    %371 = vector.load %arg19[%c0_184, %c0_185] : memref<8x128xf32, #tpu.memory_space<vmem>>, vector<8x128xf32>
    %372 = arith.truncf %370 : vector<8x32xf32> to vector<8x32xbf16>
    %c128 = arith.constant 128 : index
    %c0_186 = arith.constant 0 : index
    %373 = vector.load %arg9[%c128, %c0_186] : memref<256x128xbf16, #tpu.memory_space<vmem>>, vector<32x128xbf16>
    %cst_187 = arith.constant dense<0.000000e+00> : vector<8x128xf32>
    %374 = tpu.matmul %372, %373, %cst_187 {dimension_numbers = #tpu.dot_dimension_numbers<[1], [0], [0], [1], [0, 0, 1, 1], [], []>} : vector<8x32xbf16>, vector<32x128xbf16>, vector<8x128xf32> -> vector<8x128xf32>
    %375 = arith.addf %371, %374 : vector<8x128xf32>
    %c0_188 = arith.constant 0 : index
    %c0_189 = arith.constant 0 : index
    %376 = vector.load %arg19[%c0_188, %c0_189] : memref<8x128xf32, #tpu.memory_space<vmem>>, vector<8x128xf32>
    tpu.vector_store %arg19[%c0_188, %c0_189], %375 {strides = array<i32>} : memref<8x128xf32, #tpu.memory_space<vmem>>, vector<8x128xf32>,
    %c5_190 = arith.constant 5 : index
    %c0_191 = arith.constant 0 : index
    %c0_192 = arith.constant 0 : index
    %377 = vector.load %arg18[%c5_190, %c0_191, %c0_192] : memref<8x8x128xf32, #tpu.memory_space<vmem>>, vector<1x8x128xf32>
    %378 = vector.shape_cast %377 : vector<1x8x128xf32> to vector<8x128xf32>
    %cst_193 = arith.constant dense<0.000000e+00> : vector<8x128xf32>
    %379 = tpu.matmul %370, %222, %cst_193 {dimension_numbers = #tpu.dot_dimension_numbers<[1], [0], [0], [1], [0, 0, 1, 1], [], []>} : vector<8x32xf32>, vector<32x128xf32>, vector<8x128xf32> -> vector<8x128xf32>
    %380 = arith.addf %378, %379 : vector<8x128xf32>
    %381 = math.tanh %380 : vector<8x128xf32>
    %382 = vector.extract_strided_slice %381 {offsets = [0, 0], sizes = [8, 32], strides = [1, 1]} : vector<8x128xf32> to vector<8x32xf32>
    %383 = vector.extract_strided_slice %381 {offsets = [0, 32], sizes = [8, 32], strides = [1, 1]} : vector<8x128xf32> to vector<8x32xf32>
    %384 = vector.extract_strided_slice %381 {offsets = [0, 64], sizes = [8, 32], strides = [1, 1]} : vector<8x128xf32> to vector<8x32xf32>
    %385 = vector.extract_strided_slice %381 {offsets = [0, 96], sizes = [8, 32], strides = [1, 1]} : vector<8x128xf32> to vector<8x32xf32>
    %cst_194 = arith.constant 1.000000e+00 : f32
    %386 = vector.broadcast %cst_194 : f32 to vector<8x32xf32>
    %387 = arith.addf %383, %386 : vector<8x32xf32>
    %388 = arith.mulf %387, %364 : vector<8x32xf32>
    %cst_195 = arith.constant 1.000000e+00 : f32
    %389 = vector.broadcast %cst_195 : f32 to vector<8x32xf32>
    %390 = arith.addf %382, %389 : vector<8x32xf32>
    %391 = arith.mulf %390, %384 : vector<8x32xf32>
    %392 = arith.addf %388, %391 : vector<8x32xf32>
    %cst_196 = arith.constant 5.000000e-01 : f32
    %393 = vector.broadcast %cst_196 : f32 to vector<8x32xf32>
    %394 = arith.mulf %393, %392 : vector<8x32xf32>
    %cst_197 = arith.constant 1.000000e+00 : f32
    %395 = vector.broadcast %cst_197 : f32 to vector<8x32xf32>
    %396 = arith.addf %385, %395 : vector<8x32xf32>
    %cst_198 = arith.constant 5.000000e-01 : f32
    %397 = vector.broadcast %cst_198 : f32 to vector<8x32xf32>
    %398 = arith.mulf %397, %396 : vector<8x32xf32>
    %399 = math.tanh %394 : vector<8x32xf32>
    %400 = arith.mulf %398, %399 : vector<8x32xf32>
    %c0_199 = arith.constant 0 : index
    %c0_200 = arith.constant 0 : index
    %401 = vector.load %arg19[%c0_199, %c0_200] : memref<8x128xf32, #tpu.memory_space<vmem>>, vector<8x128xf32>
    %402 = arith.truncf %400 : vector<8x32xf32> to vector<8x32xbf16>
    %c160 = arith.constant 160 : index
    %c0_201 = arith.constant 0 : index
    %403 = vector.load %arg9[%c160, %c0_201] : memref<256x128xbf16, #tpu.memory_space<vmem>>, vector<32x128xbf16>
    %cst_202 = arith.constant dense<0.000000e+00> : vector<8x128xf32>
    %404 = tpu.matmul %402, %403, %cst_202 {dimension_numbers = #tpu.dot_dimension_numbers<[1], [0], [0], [1], [0, 0, 1, 1], [], []>} : vector<8x32xbf16>, vector<32x128xbf16>, vector<8x128xf32> -> vector<8x128xf32>
    %405 = arith.addf %401, %404 : vector<8x128xf32>
    %c0_203 = arith.constant 0 : index
    %c0_204 = arith.constant 0 : index
    %406 = vector.load %arg19[%c0_203, %c0_204] : memref<8x128xf32, #tpu.memory_space<vmem>>, vector<8x128xf32>
    tpu.vector_store %arg19[%c0_203, %c0_204], %405 {strides = array<i32>} : memref<8x128xf32, #tpu.memory_space<vmem>>, vector<8x128xf32>,
    %c6_205 = arith.constant 6 : index
    %c0_206 = arith.constant 0 : index
    %c0_207 = arith.constant 0 : index
    %407 = vector.load %arg18[%c6_205, %c0_206, %c0_207] : memref<8x8x128xf32, #tpu.memory_space<vmem>>, vector<1x8x128xf32>
    %408 = vector.shape_cast %407 : vector<1x8x128xf32> to vector<8x128xf32>
    %cst_208 = arith.constant dense<0.000000e+00> : vector<8x128xf32>
    %409 = tpu.matmul %400, %222, %cst_208 {dimension_numbers = #tpu.dot_dimension_numbers<[1], [0], [0], [1], [0, 0, 1, 1], [], []>} : vector<8x32xf32>, vector<32x128xf32>, vector<8x128xf32> -> vector<8x128xf32>
    %410 = arith.addf %408, %409 : vector<8x128xf32>
    %411 = math.tanh %410 : vector<8x128xf32>
    %412 = vector.extract_strided_slice %411 {offsets = [0, 0], sizes = [8, 32], strides = [1, 1]} : vector<8x128xf32> to vector<8x32xf32>
    %413 = vector.extract_strided_slice %411 {offsets = [0, 32], sizes = [8, 32], strides = [1, 1]} : vector<8x128xf32> to vector<8x32xf32>
    %414 = vector.extract_strided_slice %411 {offsets = [0, 64], sizes = [8, 32], strides = [1, 1]} : vector<8x128xf32> to vector<8x32xf32>
    %415 = vector.extract_strided_slice %411 {offsets = [0, 96], sizes = [8, 32], strides = [1, 1]} : vector<8x128xf32> to vector<8x32xf32>
    %cst_209 = arith.constant 1.000000e+00 : f32
    %416 = vector.broadcast %cst_209 : f32 to vector<8x32xf32>
    %417 = arith.addf %413, %416 : vector<8x32xf32>
    %418 = arith.mulf %417, %394 : vector<8x32xf32>
    %cst_210 = arith.constant 1.000000e+00 : f32
    %419 = vector.broadcast %cst_210 : f32 to vector<8x32xf32>
    %420 = arith.addf %412, %419 : vector<8x32xf32>
    %421 = arith.mulf %420, %414 : vector<8x32xf32>
    %422 = arith.addf %418, %421 : vector<8x32xf32>
    %cst_211 = arith.constant 5.000000e-01 : f32
    %423 = vector.broadcast %cst_211 : f32 to vector<8x32xf32>
    %424 = arith.mulf %423, %422 : vector<8x32xf32>
    %cst_212 = arith.constant 1.000000e+00 : f32
    %425 = vector.broadcast %cst_212 : f32 to vector<8x32xf32>
    %426 = arith.addf %415, %425 : vector<8x32xf32>
    %cst_213 = arith.constant 5.000000e-01 : f32
    %427 = vector.broadcast %cst_213 : f32 to vector<8x32xf32>
    %428 = arith.mulf %427, %426 : vector<8x32xf32>
    %429 = math.tanh %424 : vector<8x32xf32>
    %430 = arith.mulf %428, %429 : vector<8x32xf32>
    %c0_214 = arith.constant 0 : index
    %c0_215 = arith.constant 0 : index
    %431 = vector.load %arg19[%c0_214, %c0_215] : memref<8x128xf32, #tpu.memory_space<vmem>>, vector<8x128xf32>
    %432 = arith.truncf %430 : vector<8x32xf32> to vector<8x32xbf16>
    %c192 = arith.constant 192 : index
    %c0_216 = arith.constant 0 : index
    %433 = vector.load %arg9[%c192, %c0_216] : memref<256x128xbf16, #tpu.memory_space<vmem>>, vector<32x128xbf16>
    %cst_217 = arith.constant dense<0.000000e+00> : vector<8x128xf32>
    %434 = tpu.matmul %432, %433, %cst_217 {dimension_numbers = #tpu.dot_dimension_numbers<[1], [0], [0], [1], [0, 0, 1, 1], [], []>} : vector<8x32xbf16>, vector<32x128xbf16>, vector<8x128xf32> -> vector<8x128xf32>
    %435 = arith.addf %431, %434 : vector<8x128xf32>
    %c0_218 = arith.constant 0 : index
    %c0_219 = arith.constant 0 : index
    %436 = vector.load %arg19[%c0_218, %c0_219] : memref<8x128xf32, #tpu.memory_space<vmem>>, vector<8x128xf32>
    tpu.vector_store %arg19[%c0_218, %c0_219], %435 {strides = array<i32>} : memref<8x128xf32, #tpu.memory_space<vmem>>, vector<8x128xf32>,
    %c7_220 = arith.constant 7 : index
    %c0_221 = arith.constant 0 : index
    %c0_222 = arith.constant 0 : index
    %437 = vector.load %arg18[%c7_220, %c0_221, %c0_222] : memref<8x8x128xf32, #tpu.memory_space<vmem>>, vector<1x8x128xf32>
    %438 = vector.shape_cast %437 : vector<1x8x128xf32> to vector<8x128xf32>
    %cst_223 = arith.constant dense<0.000000e+00> : vector<8x128xf32>
    %439 = tpu.matmul %430, %222, %cst_223 {dimension_numbers = #tpu.dot_dimension_numbers<[1], [0], [0], [1], [0, 0, 1, 1], [], []>} : vector<8x32xf32>, vector<32x128xf32>, vector<8x128xf32> -> vector<8x128xf32>
    %440 = arith.addf %438, %439 : vector<8x128xf32>
    %441 = math.tanh %440 : vector<8x128xf32>
    %442 = vector.extract_strided_slice %441 {offsets = [0, 0], sizes = [8, 32], strides = [1, 1]} : vector<8x128xf32> to vector<8x32xf32>
    %443 = vector.extract_strided_slice %441 {offsets = [0, 32], sizes = [8, 32], strides = [1, 1]} : vector<8x128xf32> to vector<8x32xf32>
    %444 = vector.extract_strided_slice %441 {offsets = [0, 64], sizes = [8, 32], strides = [1, 1]} : vector<8x128xf32> to vector<8x32xf32>
    %445 = vector.extract_strided_slice %441 {offsets = [0, 96], sizes = [8, 32], strides = [1, 1]} : vector<8x128xf32> to vector<8x32xf32>
    %cst_224 = arith.constant 1.000000e+00 : f32
    %446 = vector.broadcast %cst_224 : f32 to vector<8x32xf32>
    %447 = arith.addf %443, %446 : vector<8x32xf32>
    %448 = arith.mulf %447, %424 : vector<8x32xf32>
    %cst_225 = arith.constant 1.000000e+00 : f32
    %449 = vector.broadcast %cst_225 : f32 to vector<8x32xf32>
    %450 = arith.addf %442, %449 : vector<8x32xf32>
    %451 = arith.mulf %450, %444 : vector<8x32xf32>
    %452 = arith.addf %448, %451 : vector<8x32xf32>
    %cst_226 = arith.constant 5.000000e-01 : f32
    %453 = vector.broadcast %cst_226 : f32 to vector<8x32xf32>
    %454 = arith.mulf %453, %452 : vector<8x32xf32>
    %cst_227 = arith.constant 1.000000e+00 : f32
    %455 = vector.broadcast %cst_227 : f32 to vector<8x32xf32>
    %456 = arith.addf %445, %455 : vector<8x32xf32>
    %cst_228 = arith.constant 5.000000e-01 : f32
    %457 = vector.broadcast %cst_228 : f32 to vector<8x32xf32>
    %458 = arith.mulf %457, %456 : vector<8x32xf32>
    %459 = math.tanh %454 : vector<8x32xf32>
    %460 = arith.mulf %458, %459 : vector<8x32xf32>
    %c0_229 = arith.constant 0 : index
    %c0_230 = arith.constant 0 : index
    %461 = vector.load %arg19[%c0_229, %c0_230] : memref<8x128xf32, #tpu.memory_space<vmem>>, vector<8x128xf32>
    %462 = arith.truncf %460 : vector<8x32xf32> to vector<8x32xbf16>
    %c224 = arith.constant 224 : index
    %c0_231 = arith.constant 0 : index
    %463 = vector.load %arg9[%c224, %c0_231] : memref<256x128xbf16, #tpu.memory_space<vmem>>, vector<32x128xbf16>
    %cst_232 = arith.constant dense<0.000000e+00> : vector<8x128xf32>
    %464 = tpu.matmul %462, %463, %cst_232 {dimension_numbers = #tpu.dot_dimension_numbers<[1], [0], [0], [1], [0, 0, 1, 1], [], []>} : vector<8x32xbf16>, vector<32x128xbf16>, vector<8x128xf32> -> vector<8x128xf32>
    %465 = arith.addf %461, %464 : vector<8x128xf32>
    %c0_233 = arith.constant 0 : index
    %c0_234 = arith.constant 0 : index
    %466 = vector.load %arg19[%c0_233, %c0_234] : memref<8x128xf32, #tpu.memory_space<vmem>>, vector<8x128xf32>
    tpu.vector_store %arg19[%c0_233, %c0_234], %465 {strides = array<i32>} : memref<8x128xf32, #tpu.memory_space<vmem>>, vector<8x128xf32>,
    %c0_235 = arith.constant 0 : index
    %c0_236 = arith.constant 0 : index
    %467 = vector.load %arg19[%c0_235, %c0_236] : memref<8x128xf32, #tpu.memory_space<vmem>>, vector<8x128xf32>
    %c0_237 = arith.constant 0 : index
    %c0_238 = arith.constant 0 : index
    %468 = vector.load %arg10[%c0_237, %c0_238] : memref<1x128xf32, #tpu.memory_space<vmem>>, vector<1x128xf32>
    %469 = vector.broadcast %468 : vector<1x128xf32> to vector<8x128xf32>
    %470 = arith.addf %467, %469 : vector<8x128xf32>
    %cst_239 = arith.constant 0.000000e+00 : f32
    %471 = vector.broadcast %cst_239 : f32 to vector<8x128xf32>
    %472 = arith.cmpf oge, %470, %471 : vector<8x128xf32>
    %cst_240 = arith.constant 0.00999999977 : f32
    %473 = vector.broadcast %cst_240 : f32 to vector<8x128xf32>
    %474 = arith.mulf %473, %470 : vector<8x128xf32>
    %475 = arith.select %472, %470, %474 : vector<8x128xi1>, vector<8x128xf32>
    %476 = arith.truncf %475 : vector<8x128xf32> to vector<8x128xbf16>
    %c0_241 = arith.constant 0 : index
    %c0_242 = arith.constant 0 : index
    %477 = vector.load %arg11[%c0_241, %c0_242] : memref<128x128xbf16, #tpu.memory_space<vmem>>, vector<128x128xbf16>
    %cst_243 = arith.constant dense<0.000000e+00> : vector<8x128xf32>
    %478 = tpu.matmul %476, %477, %cst_243 {dimension_numbers = #tpu.dot_dimension_numbers<[1], [0], [0], [1], [0, 0, 1, 1], [], []>} : vector<8x128xbf16>, vector<128x128xbf16>, vector<8x128xf32> -> vector<8x128xf32>
    %c0_244 = arith.constant 0 : index
    %c0_245 = arith.constant 0 : index
    %479 = vector.load %arg12[%c0_244, %c0_245] : memref<1x128xf32, #tpu.memory_space<vmem>>, vector<1x128xf32>
    %480 = vector.broadcast %479 : vector<1x128xf32> to vector<8x128xf32>
    %481 = arith.addf %478, %480 : vector<8x128xf32>
    %cst_246 = arith.constant 0.000000e+00 : f32
    %482 = vector.broadcast %cst_246 : f32 to vector<8x128xf32>
    %483 = arith.cmpf oge, %481, %482 : vector<8x128xf32>
    %cst_247 = arith.constant 0.00999999977 : f32
    %484 = vector.broadcast %cst_247 : f32 to vector<8x128xf32>
    %485 = arith.mulf %484, %481 : vector<8x128xf32>
    %486 = arith.select %483, %481, %485 : vector<8x128xi1>, vector<8x128xf32>
    %487 = arith.truncf %486 : vector<8x128xf32> to vector<8x128xbf16>
    %c0_248 = arith.constant 0 : index
    %c0_249 = arith.constant 0 : index
    %488 = vector.load %arg13[%c0_248, %c0_249] : memref<128x128xbf16, #tpu.memory_space<vmem>>, vector<128x128xbf16>
    %cst_250 = arith.constant dense<0.000000e+00> : vector<8x128xf32>
    %489 = tpu.matmul %487, %488, %cst_250 {dimension_numbers = #tpu.dot_dimension_numbers<[1], [0], [0], [1], [0, 0, 1, 1], [], []>} : vector<8x128xbf16>, vector<128x128xbf16>, vector<8x128xf32> -> vector<8x128xf32>
    %c0_251 = arith.constant 0 : index
    %c0_252 = arith.constant 0 : index
    %490 = vector.load %arg14[%c0_251, %c0_252] : memref<1x128xf32, #tpu.memory_space<vmem>>, vector<1x128xf32>
    %491 = vector.broadcast %490 : vector<1x128xf32> to vector<8x128xf32>
    %492 = arith.addf %489, %491 : vector<8x128xf32>
    %cst_253 = arith.constant 0.000000e+00 : f32
    %493 = vector.broadcast %cst_253 : f32 to vector<8x128xf32>
    %494 = arith.cmpf oge, %492, %493 : vector<8x128xf32>
    %cst_254 = arith.constant 0.00999999977 : f32
    %495 = vector.broadcast %cst_254 : f32 to vector<8x128xf32>
    %496 = arith.mulf %495, %492 : vector<8x128xf32>
    %497 = arith.select %494, %492, %496 : vector<8x128xi1>, vector<8x128xf32>
    %498 = arith.truncf %497 : vector<8x128xf32> to vector<8x128xbf16>
    %c0_255 = arith.constant 0 : index
    %c0_256 = arith.constant 0 : index
    %499 = vector.load %arg15[%c0_255, %c0_256] : memref<128x128xbf16, #tpu.memory_space<vmem>>, vector<128x128xbf16>
    %cst_257 = arith.constant dense<0.000000e+00> : vector<8x128xf32>
    %500 = tpu.matmul %498, %499, %cst_257 {dimension_numbers = #tpu.dot_dimension_numbers<[1], [0], [0], [1], [0, 0, 1, 1], [], []>} : vector<8x128xbf16>, vector<128x128xbf16>, vector<8x128xf32> -> vector<8x128xf32>
    %c0_258 = arith.constant 0 : index
    %c0_259 = arith.constant 0 : index
    %501 = vector.load %arg16[%c0_258, %c0_259] : memref<1x128xf32, #tpu.memory_space<vmem>>, vector<1x128xf32>
    %502 = vector.broadcast %501 : vector<1x128xf32> to vector<8x128xf32>
    %503 = arith.addf %500, %502 : vector<8x128xf32>
    %c0_260 = arith.constant 0 : index
    %c0_261 = arith.constant 0 : index
    %504 = vector.load %arg17[%c0_260, %c0_261] : memref<8x128xf32, #tpu.memory_space<vmem>>, vector<8x128xf32>
    tpu.vector_store %arg17[%c0_260, %c0_261], %503 {strides = array<i32>} : memref<8x128xf32, #tpu.memory_space<vmem>>, vector<8x128xf32>,
    return
  }
  func.func @transform_0(%arg0: i32) -> (i32, i32, i32) {
    %c0_i32 = arith.constant 0 : i32
    %c0_i32_0 = arith.constant 0 : i32
    %c0_i32_1 = arith.constant 0 : i32
    return %c0_i32, %arg0, %c0_i32_0 : i32, i32, i32
  }
  func.func @transform_1(%arg0: i32) -> (i32, i32) {
    %c0_i32 = arith.constant 0 : i32
    %c0_i32_0 = arith.constant 0 : i32
    %c0_i32_1 = arith.constant 0 : i32
    return %c0_i32, %c0_i32_0 : i32, i32
  }
  func.func @transform_2(%arg0: i32) -> (i32, i32) {
    %c0_i32 = arith.constant 0 : i32
    %c0_i32_0 = arith.constant 0 : i32
    %c0_i32_1 = arith.constant 0 : i32
    return %c0_i32, %c0_i32_0 : i32, i32
  }
  func.func @transform_3(%arg0: i32) -> (i32, i32) {
    %c0_i32 = arith.constant 0 : i32
    %c0_i32_0 = arith.constant 0 : i32
    %c0_i32_1 = arith.constant 0 : i32
    return %c0_i32, %c0_i32_0 : i32, i32
  }
  func.func @transform_4(%arg0: i32) -> (i32, i32) {
    %c0_i32 = arith.constant 0 : i32
    %c0_i32_0 = arith.constant 0 : i32
    %c0_i32_1 = arith.constant 0 : i32
    return %c0_i32, %c0_i32_0 : i32, i32
  }
  func.func @transform_5(%arg0: i32) -> (i32, i32) {
    %c0_i32 = arith.constant 0 : i32
    %c0_i32_0 = arith.constant 0 : i32
    %c0_i32_1 = arith.constant 0 : i32
    return %c0_i32, %c0_i32_0 : i32, i32
  }
  func.func @transform_6(%arg0: i32) -> (i32, i32) {
    %c0_i32 = arith.constant 0 : i32
    %c0_i32_0 = arith.constant 0 : i32
    %c0_i32_1 = arith.constant 0 : i32
    return %c0_i32, %c0_i32_0 : i32, i32
  }
  func.func @transform_7(%arg0: i32) -> (i32, i32) {
    %c0_i32 = arith.constant 0 : i32
    %c0_i32_0 = arith.constant 0 : i32
    %c0_i32_1 = arith.constant 0 : i32
    return %c0_i32, %c0_i32_0 : i32, i32
  }
  func.func @transform_8(%arg0: i32) -> (i32, i32) {
    %c0_i32 = arith.constant 0 : i32
    %c0_i32_0 = arith.constant 0 : i32
    %c0_i32_1 = arith.constant 0 : i32
    return %c0_i32, %c0_i32_0 : i32, i32
  }
  func.func @transform_9(%arg0: i32) -> (i32, i32) {
    %c0_i32 = arith.constant 0 : i32
    %c0_i32_0 = arith.constant 0 : i32
    %c0_i32_1 = arith.constant 0 : i32
    return %c0_i32, %c0_i32_0 : i32, i32
  }
  func.func @transform_10(%arg0: i32) -> (i32, i32) {
    %c0_i32 = arith.constant 0 : i32
    %c0_i32_0 = arith.constant 0 : i32
    %c0_i32_1 = arith.constant 0 : i32
    return %c0_i32, %c0_i32_0 : i32, i32
  }
  func.func @transform_11(%arg0: i32) -> (i32, i32) {
    %c0_i32 = arith.constant 0 : i32
    %c0_i32_0 = arith.constant 0 : i32
    %c0_i32_1 = arith.constant 0 : i32
    return %c0_i32, %c0_i32_0 : i32, i32
  }
  func.func @transform_12(%arg0: i32) -> (i32, i32) {
    %c0_i32 = arith.constant 0 : i32
    %c0_i32_0 = arith.constant 0 : i32
    %c0_i32_1 = arith.constant 0 : i32
    return %c0_i32, %c0_i32_0 : i32, i32
  }
  func.func @transform_13(%arg0: i32) -> (i32, i32) {
    %c0_i32 = arith.constant 0 : i32
    %c0_i32_0 = arith.constant 0 : i32
    %c0_i32_1 = arith.constant 0 : i32
    return %c0_i32, %c0_i32_0 : i32, i32
  }
  func.func @transform_14(%arg0: i32) -> (i32, i32) {
    %c0_i32 = arith.constant 0 : i32
    %c0_i32_0 = arith.constant 0 : i32
    %c0_i32_1 = arith.constant 0 : i32
    return %c0_i32, %c0_i32_0 : i32, i32
  }
  func.func @transform_15(%arg0: i32) -> (i32, i32) {
    %c0_i32 = arith.constant 0 : i32
    %c0_i32_0 = arith.constant 0 : i32
    %c0_i32_1 = arith.constant 0 : i32
    return %c0_i32, %c0_i32_0 : i32, i32
  }
  func.func @transform_16(%arg0: i32) -> (i32, i32) {
    %c0_i32 = arith.constant 0 : i32
    %c0_i32_0 = arith.constant 0 : i32
    return %arg0, %c0_i32 : i32, i32
  }
}

</mosaic_0001>

<llo_original>
// kernel: tpu_custom_call.1
$region0: #{tpu_custom_call.1}
  #allocation0 [shape = 'u32[]', space=smem, size = 0x4, offset = 0x4, fixed_abs, tag = 'smem constant byte address 0x4 - core index']
  #allocation1 [shape = 'u32[72,128]{1,0:T(1,128)}', space=vmem, size = 0x9000, scoped, tag = 'internal scratch']
  #allocation2 [shape = 'f32[8,8,128]{2,1,0:T(8,128)}', space=vmem, size = 0x8000, scoped, tag = 'scratch operand']
  #allocation3 [shape = 'f32[8,128]{1,0:T(8,128)}', space=vmem, size = 0x1000, scoped, tag = 'scratch operand']
  %s0 = inlined_call_operand.hbm [shape: f32[8,8,8], index: 0, kind: input, shape index: {}]
  %s1 = inlined_call_operand.hbm [shape: bf16[8,32], index: 1, kind: input, shape index: {}]
  %s2 = inlined_call_operand.vmem [shape: f32[1,32], index: 2, kind: input, shape index: {}]
  %s3 = inlined_call_operand.hbm [shape: bf16[32,32], index: 3, kind: input, shape index: {}]
  %s4 = inlined_call_operand.vmem [shape: f32[1,32], index: 4, kind: input, shape index: {}]
  %s5 = inlined_call_operand.hbm [shape: bf16[32,128], index: 5, kind: input, shape index: {}]
  %s6 = inlined_call_operand.vmem [shape: f32[1,128], index: 6, kind: input, shape index: {}]
  %s7 = inlined_call_operand.hbm [shape: f32[32,128], index: 7, kind: input, shape index: {}]
  %s8 = inlined_call_operand.hbm [shape: bf16[256,128], index: 8, kind: input, shape index: {}]
  %s9 = inlined_call_operand.vmem [shape: f32[1,128], index: 9, kind: input, shape index: {}]
  %s10 = inlined_call_operand.hbm [shape: bf16[128,128], index: 10, kind: input, shape index: {}]
  %s11 = inlined_call_operand.vmem [shape: f32[1,128], index: 11, kind: input, shape index: {}]
  %s12 = inlined_call_operand.hbm [shape: bf16[128,128], index: 12, kind: input, shape index: {}]
  %s13 = inlined_call_operand.vmem [shape: f32[1,128], index: 13, kind: input, shape index: {}]
  %s14 = inlined_call_operand.hbm [shape: bf16[128,128], index: 14, kind: input, shape index: {}]
  %s15 = inlined_call_operand.vmem [shape: f32[1,128], index: 15, kind: input, shape index: {}]
  %s16 = inlined_call_operand.hbm [shape: f32[8,128], index: 16, kind: output, shape index: {}]
  %s17 = sld [smem:[#allocation0]]
  $region110: #{tpu_custom_call.1} parent=0
    _
  %s19 = ssub.s32 1, %s17
  %s20 = scalar_select 0, %s19, %s17
  $region1: #{tpu_custom_call.1} parent=0
    #allocation4 [shape = 'u8[32768]{0}', space=vmem, size = 0x8000, scoped, tag = 'input window, operand 0, single buffered']
    #allocation5 [shape = 's32[1]{0}', space=sflag, size = 0x4, scoped, tag = 'scoped memory for tpu_custom_call.1']
    #allocation6 [shape = 's32[1]{0}', space=sflag, size = 0x4, scoped, tag = 'scoped memory for tpu_custom_call.1']
    #allocation7 [shape = 'u8[2048]{0}', space=vmem, size = 0x800, scoped, tag = 'input window, operand 1, single buffered']
    #allocation8 [shape = 's32[1]{0}', space=sflag, size = 0x4, scoped, tag = 'scoped memory for tpu_custom_call.1']
    #allocation9 [shape = 'u8[8192]{0}', space=vmem, size = 0x2000, scoped, tag = 'input window, operand 3, single buffered']
    #allocation10 [shape = 'u8[8192]{0}', space=vmem, size = 0x2000, scoped, tag = 'input window, operand 5, single buffered']
    #allocation11 [shape = 's32[1]{0}', space=sflag, size = 0x4, scoped, tag = 'scoped memory for tpu_custom_call.1']
    #allocation12 [shape = 'u8[16384]{0}', space=vmem, size = 0x4000, scoped, tag = 'input window, operand 7, single buffered']
    #allocation13 [shape = 'u8[65536]{0}', space=vmem, size = 0x10000, scoped, tag = 'input window, operand 8, single buffered']
    #allocation14 [shape = 's32[1]{0}', space=sflag, size = 0x4, scoped, tag = 'scoped memory for tpu_custom_call.1']
    #allocation15 [shape = 'u8[32768]{0}', space=vmem, size = 0x8000, scoped, tag = 'input window, operand 10, single buffered']
    #allocation16 [shape = 'u8[32768]{0}', space=vmem, size = 0x8000, scoped, tag = 'input window, operand 12, single buffered']
    #allocation17 [shape = 's32[1]{0}', space=sflag, size = 0x4, scoped, tag = 'scoped memory for tpu_custom_call.1']
    #allocation18 [shape = 'u8[32768]{0}', space=vmem, size = 0x8000, scoped, tag = 'input window, operand 14, single buffered']
    #allocation19 [shape = 'u8[4096]{0}', space=vmem, size = 0x1000, scoped, tag = 'output window, operand 0, single buffered']
    %21 = vsyncpa [#allocation5], 0
    %22 = vsyncpa [#allocation8], 0
    %23 = vsyncpa [#allocation11], 0
    %24 = vsyncpa [#allocation14], 0
    %25 = vsyncpa [#allocation17], 0
    %26 = vsyncpa [#allocation6], 0
    // Predicated region
    $region2: #{tpu_custom_call.1} parent=1 // pred_check
      _
    $region3: #{tpu_custom_call.1} parent=1 // pred_check_branch
      %28 = sbr.rel (0) target = $region5
    $region4: #{tpu_custom_call.1} parent=1 // pred_region
      %30 = vsyncadd [#allocation5], 0
      %s31 = sshll.u32 %s0, 4
      %s32 = int_to_ptr.hbm [resolvable:$true] %s31
      %s33 = sshll.u32 [#allocation4], 4
      %s34 = int_to_ptr.vmem [resolvable:$true] %s33
      %39 = dma.hbm_to_vmem [thread:$0]  %s32, 1024, %s34, [#allocation5], 128, 128, 8
    $region5: #{tpu_custom_call.1} parent=1 // pred_fallthru
      _
    // Predicated region
    $region6: #{tpu_custom_call.1} parent=1 // pred_check
      _
    $region7: #{tpu_custom_call.1} parent=1 // pred_check_branch
      %41 = sbr.rel (0) target = $region9
    $region8: #{tpu_custom_call.1} parent=1 // pred_region
      %43 = vsyncadd [#allocation8], 0
      %s45 = sshll.u32 %s1, 4
      %s46 = int_to_ptr.hbm [resolvable:$true] %s45
      %s47 = sshll.u32 [#allocation7], 4
      %s48 = int_to_ptr.vmem [resolvable:$true] %s47
      %50 = dma.hbm_to_vmem [thread:$0]  %s46, 64, %s48, [#allocation8]
    $region9: #{tpu_custom_call.1} parent=1 // pred_fallthru
      _
    // Predicated region
    $region10: #{tpu_custom_call.1} parent=1 // pred_check
      _
    $region11: #{tpu_custom_call.1} parent=1 // pred_check_branch
      %52 = sbr.rel (0) target = $region13
    $region12: #{tpu_custom_call.1} parent=1 // pred_region
      _
    $region13: #{tpu_custom_call.1} parent=1 // pred_fallthru
      _
    // Predicated region
    $region14: #{tpu_custom_call.1} parent=1 // pred_check
      _
    $region15: #{tpu_custom_call.1} parent=1 // pred_check_branch
      %54 = sbr.rel (0) target = $region17
    $region16: #{tpu_custom_call.1} parent=1 // pred_region
      %56 = vsyncadd [#allocation8], 0
      %s57 = sshll.u32 %s3, 4
      %s58 = int_to_ptr.hbm [resolvable:$true] %s57
      %s59 = sshll.u32 [#allocation9], 4
      %s60 = int_to_ptr.vmem [resolvable:$true] %s59
      %65 = dma.hbm_to_vmem [thread:$0]  %s58, 256, %s60, [#allocation8], 64, 64, 4
    $region17: #{tpu_custom_call.1} parent=1 // pred_fallthru
      _
    // Predicated region
    $region18: #{tpu_custom_call.1} parent=1 // pred_check
      _
    $region19: #{tpu_custom_call.1} parent=1 // pred_check_branch
      %67 = sbr.rel (0) target = $region21
    $region20: #{tpu_custom_call.1} parent=1 // pred_region
      _
    $region21: #{tpu_custom_call.1} parent=1 // pred_fallthru
      _
    // Predicated region
    $region22: #{tpu_custom_call.1} parent=1 // pred_check
      _
    $region23: #{tpu_custom_call.1} parent=1 // pred_check_branch
      %69 = sbr.rel (0) target = $region25
    $region24: #{tpu_custom_call.1} parent=1 // pred_region
      %71 = vsyncadd [#allocation11], 0
      %s72 = sshll.u32 %s5, 4
      %s73 = int_to_ptr.hbm [resolvable:$true] %s72
      %s74 = sshll.u32 [#allocation10], 4
      %s75 = int_to_ptr.vmem [resolvable:$true] %s74
      %80 = dma.hbm_to_vmem [thread:$0]  %s73, 256, %s75, [#allocation11], 64, 64, 4
    $region25: #{tpu_custom_call.1} parent=1 // pred_fallthru
      _
    // Predicated region
    $region26: #{tpu_custom_call.1} parent=1 // pred_check
      _
    $region27: #{tpu_custom_call.1} parent=1 // pred_check_branch
      %82 = sbr.rel (0) target = $region29
    $region28: #{tpu_custom_call.1} parent=1 // pred_region
      _
    $region29: #{tpu_custom_call.1} parent=1 // pred_fallthru
      _
    // Predicated region
    $region30: #{tpu_custom_call.1} parent=1 // pred_check
      _
    $region31: #{tpu_custom_call.1} parent=1 // pred_check_branch
      %84 = sbr.rel (0) target = $region33
    $region32: #{tpu_custom_call.1} parent=1 // pred_region
      %86 = vsyncadd [#allocation11], 0
      %s87 = sshll.u32 %s7, 4
      %s88 = int_to_ptr.hbm [resolvable:$true] %s87
      %s89 = sshll.u32 [#allocation12], 4
      %s90 = int_to_ptr.vmem [resolvable:$true] %s89
      %95 = dma.hbm_to_vmem [thread:$0]  %s88, 512, %s90, [#allocation11], 128, 128, 8
    $region33: #{tpu_custom_call.1} parent=1 // pred_fallthru
      _
    // Predicated region
    $region34: #{tpu_custom_call.1} parent=1 // pred_check
      _
    $region35: #{tpu_custom_call.1} parent=1 // pred_check_branch
      %97 = sbr.rel (0) target = $region37
    $region36: #{tpu_custom_call.1} parent=1 // pred_region
      %99 = vsyncadd [#allocation14], 0
      %s100 = sshll.u32 %s8, 4
      %s101 = int_to_ptr.hbm [resolvable:$true] %s100
      %s102 = sshll.u32 [#allocation13], 4
      %s103 = int_to_ptr.vmem [resolvable:$true] %s102
      %108 = dma.hbm_to_vmem [thread:$0]  %s101, 2048, %s103, [#allocation14], 64, 64, 4
    $region37: #{tpu_custom_call.1} parent=1 // pred_fallthru
      _
    // Predicated region
    $region38: #{tpu_custom_call.1} parent=1 // pred_check
      _
    $region39: #{tpu_custom_call.1} parent=1 // pred_check_branch
      %110 = sbr.rel (0) target = $region41
    $region40: #{tpu_custom_call.1} parent=1 // pred_region
      _
    $region41: #{tpu_custom_call.1} parent=1 // pred_fallthru
      _
    // Predicated region
    $region42: #{tpu_custom_call.1} parent=1 // pred_check
      _
    $region43: #{tpu_custom_call.1} parent=1 // pred_check_branch
      %112 = sbr.rel (0) target = $region45
    $region44: #{tpu_custom_call.1} parent=1 // pred_region
      %114 = vsyncadd [#allocation14], 0
      %s115 = sshll.u32 %s10, 4
      %s116 = int_to_ptr.hbm [resolvable:$true] %s115
      %s117 = sshll.u32 [#allocation15], 4
      %s118 = int_to_ptr.vmem [resolvable:$true] %s117
      %123 = dma.hbm_to_vmem [thread:$0]  %s116, 1024, %s118, [#allocation14], 64, 64, 4
    $region45: #{tpu_custom_call.1} parent=1 // pred_fallthru
      _
    // Predicated region
    $region46: #{tpu_custom_call.1} parent=1 // pred_check
      _
    $region47: #{tpu_custom_call.1} parent=1 // pred_check_branch
      %125 = sbr.rel (0) target = $region49
    $region48: #{tpu_custom_call.1} parent=1 // pred_region
      _
    $region49: #{tpu_custom_call.1} parent=1 // pred_fallthru
      _
    // Predicated region
    $region50: #{tpu_custom_call.1} parent=1 // pred_check
      _
    $region51: #{tpu_custom_call.1} parent=1 // pred_check_branch
      %127 = sbr.rel (0) target = $region53
    $region52: #{tpu_custom_call.1} parent=1 // pred_region
      %129 = vsyncadd [#allocation17], 0
      %s130 = sshll.u32 %s12, 4
      %s131 = int_to_ptr.hbm [resolvable:$true] %s130
      %s132 = sshll.u32 [#allocation16], 4
      %s133 = int_to_ptr.vmem [resolvable:$true] %s132
      %138 = dma.hbm_to_vmem [thread:$0]  %s131, 1024, %s133, [#allocation17], 64, 64, 4
    $region53: #{tpu_custom_call.1} parent=1 // pred_fallthru
      _
    // Predicated region
    $region54: #{tpu_custom_call.1} parent=1 // pred_check
      _
    $region55: #{tpu_custom_call.1} parent=1 // pred_check_branch
      %140 = sbr.rel (0) target = $region57
    $region56: #{tpu_custom_call.1} parent=1 // pred_region
      _
    $region57: #{tpu_custom_call.1} parent=1 // pred_fallthru
      _
    // Predicated region
    $region58: #{tpu_custom_call.1} parent=1 // pred_check
      _
    $region59: #{tpu_custom_call.1} parent=1 // pred_check_branch
      %142 = sbr.rel (0) target = $region61
    $region60: #{tpu_custom_call.1} parent=1 // pred_region
      %144 = vsyncadd [#allocation17], 0
      %s145 = sshll.u32 %s14, 4
      %s146 = int_to_ptr.hbm [resolvable:$true] %s145
      %s147 = sshll.u32 [#allocation18], 4
      %s148 = int_to_ptr.vmem [resolvable:$true] %s147
      %153 = dma.hbm_to_vmem [thread:$0]  %s146, 1024, %s148, [#allocation17], 64, 64, 4
    $region61: #{tpu_custom_call.1} parent=1 // pred_fallthru
      _
    // Predicated region
    $region62: #{tpu_custom_call.1} parent=1 // pred_check
      _
    $region63: #{tpu_custom_call.1} parent=1 // pred_check_branch
      %155 = sbr.rel (0) target = $region65
    $region64: #{tpu_custom_call.1} parent=1 // pred_region
      _
    $region65: #{tpu_custom_call.1} parent=1 // pred_fallthru
      _
    // Predicated region
    $region66: #{tpu_custom_call.1} parent=1 // pred_check
      _
    $region67: #{tpu_custom_call.1} parent=1 // pred_check_branch
      %157 = sbr.rel (0) target = $region69
    $region68: #{tpu_custom_call.1} parent=1 // pred_region
      %159 = dma.done [#allocation5], 1024
    $region69: #{tpu_custom_call.1} parent=1 // pred_fallthru
      _
    // Predicated region
    $region70: #{tpu_custom_call.1} parent=1 // pred_check
      _
    $region71: #{tpu_custom_call.1} parent=1 // pred_check_branch
      %161 = sbr.rel (0) target = $region73
    $region72: #{tpu_custom_call.1} parent=1 // pred_region
      %163 = dma.done [#allocation8], 64
    $region73: #{tpu_custom_call.1} parent=1 // pred_fallthru
      _
    // Predicated region
    $region74: #{tpu_custom_call.1} parent=1 // pred_check
      _
    $region75: #{tpu_custom_call.1} parent=1 // pred_check_branch
      %165 = sbr.rel (0) target = $region77
    $region76: #{tpu_custom_call.1} parent=1 // pred_region
      %167 = dma.done [#allocation8], 256
    $region77: #{tpu_custom_call.1} parent=1 // pred_fallthru
      _
    // Predicated region
    $region78: #{tpu_custom_call.1} parent=1 // pred_check
      _
    $region79: #{tpu_custom_call.1} parent=1 // pred_check_branch
      %169 = sbr.rel (0) target = $region81
    $region80: #{tpu_custom_call.1} parent=1 // pred_region
      %171 = dma.done [#allocation11], 256
    $region81: #{tpu_custom_call.1} parent=1 // pred_fallthru
      _
    // Predicated region
    $region82: #{tpu_custom_call.1} parent=1 // pred_check
      _
    $region83: #{tpu_custom_call.1} parent=1 // pred_check_branch
      %173 = sbr.rel (0) target = $region85
    $region84: #{tpu_custom_call.1} parent=1 // pred_region
      %175 = dma.done [#allocation11], 512
    $region85: #{tpu_custom_call.1} parent=1 // pred_fallthru
      _
    // Predicated region
    $region86: #{tpu_custom_call.1} parent=1 // pred_check
      _
    $region87: #{tpu_custom_call.1} parent=1 // pred_check_branch
      %177 = sbr.rel (0) target = $region89
    $region88: #{tpu_custom_call.1} parent=1 // pred_region
      %179 = dma.done [#allocation14], 2048
    $region89: #{tpu_custom_call.1} parent=1 // pred_fallthru
      _
    // Predicated region
    $region90: #{tpu_custom_call.1} parent=1 // pred_check
      _
    $region91: #{tpu_custom_call.1} parent=1 // pred_check_branch
      %181 = sbr.rel (0) target = $region93
    $region92: #{tpu_custom_call.1} parent=1 // pred_region
      %183 = dma.done [#allocation14], 1024
    $region93: #{tpu_custom_call.1} parent=1 // pred_fallthru
      _
    // Predicated region
    $region94: #{tpu_custom_call.1} parent=1 // pred_check
      _
    $region95: #{tpu_custom_call.1} parent=1 // pred_check_branch
      %185 = sbr.rel (0) target = $region97
    $region96: #{tpu_custom_call.1} parent=1 // pred_region
      %187 = dma.done [#allocation17], 1024
    $region97: #{tpu_custom_call.1} parent=1 // pred_fallthru
      _
    // Predicated region
    $region98: #{tpu_custom_call.1} parent=1 // pred_check
      _
    $region99: #{tpu_custom_call.1} parent=1 // pred_check_branch
      %189 = sbr.rel (0) target = $region101
    $region100: #{tpu_custom_call.1} parent=1 // pred_region
      %191 = dma.done [#allocation17], 1024
    $region101: #{tpu_custom_call.1} parent=1 // pred_fallthru
      _
    %v193 = vld [vmem:[#allocation7] sm:$0xf]
    %v194 = vld [vmem:[%s2] sm:$0x1]
    %v195 = vld [vmem:[#allocation9] sm:$0xf]
    %v196 = vld [vmem:[#allocation9 + $0x4] sm:$0xf]
    %v197 = vld [vmem:[#allocation9 + $0x8] sm:$0xf]
    %v198 = vld [vmem:[#allocation9 + $0xc] sm:$0xf]
    %v199 = vld [vmem:[%s4] sm:$0x1]
    %v200 = vld [vmem:[#allocation10] sm:$0xf]
    %v201 = vld [vmem:[#allocation10 + $0x4] sm:$0xf]
    %v202 = vld [vmem:[#allocation10 + $0x8] sm:$0xf]
    %v203 = vld [vmem:[#allocation10 + $0xc] sm:$0xf]
    %v204 = vld [vmem:[%s6] sm:$0x1]
    %v205 = vld [vmem:[#allocation4] sm:$0xff]
    %v206 = vpack.c.bf16 %v205, %v205
    %v208 = vperm.slane %v194, 0
    %vm210 = vcmask 64512
    %v212 = vsel %vm210, %v206, 0
    %vm214 = vcmask 1043456
    %v216 = vsel %vm214, %v193, 0
    %218 = vmatpush.bf16.msra.mxu0 0
    %219 = vmatpush.bf16.msra.mxu0 0
    %220 = vmatpush.bf16.msra.mxu0 0
    %221 = vmatpush.bf16.msra.mxu0 0
    %222 = vmatpush.bf16.msra.mxu0 0
    %223 = vmatpush.bf16.msra.mxu0 0
    %224 = vmatpush.bf16.msra.mxu0 0
    %225 = vmatpush.bf16.msra.mxu0 %v216
    %226 = vmatmul.bf16.gmra.mxu0 %v212
    %v227 = vpop.f32.mrf.mxu0
    %v228 = vadd.f32 %v208, %v227
    %v229 = vpop.f32.mrf.mxu0
    %230 = vdwg.mxu0
    %vm231 = vcmp.ge.f32.partialorder %v228, 0.0
    %v232 = vmul.f32 %v228, 0.01
    %v233 = vsel %vm231, %v228, %v232
    %v234 = vpack.c.bf16 %v233, %v233
    %v236 = vperm.slane %v199, 0
    %v242 = vunpack.c.l.b16 %v195
    %v243 = vunpack.c.l.b16 %v196
    %v244 = vunpack.c.l.b16 %v197
    %v245 = vunpack.c.l.b16 %v198
    %v246 = vpack.c.b16 %v243, %v242
    %v247 = vpack.c.b16 %v245, %v244
    %vm250 = vcmask 261120
    %v252 = vsel %vm250, %v234, 0
    %254 = vmatpush.bf16.msra.mxu0 0
    %255 = vmatpush.bf16.msra.mxu0 0
    %256 = vmatpush.bf16.msra.mxu0 0
    %257 = vmatpush.bf16.msra.mxu0 0
    %258 = vmatpush.bf16.msra.mxu0 0
    %259 = vmatpush.bf16.msra.mxu0 0
    %260 = vmatpush.bf16.msra.mxu0 %v247
    %261 = vmatpush.bf16.msra.mxu0 %v246
    %262 = vmatmul.bf16.gmra.mxu0 %v252
    %v263 = vpop.f32.mrf.mxu0
    %v264 = vadd.f32 %v236, %v263
    %v265 = vpop.f32.mrf.mxu0
    %266 = vdwg.mxu0
    %vm267 = vcmp.ge.f32.partialorder %v264, 0.0
    %v268 = vmul.f32 %v264, 0.01
    %v269 = vsel %vm267, %v264, %v268
    %v270 = vpack.c.bf16 %v269, %v269
    %v272 = vperm.slane %v204, 0
    %v278 = vunpack.c.l.b16 %v200
    %v279 = vunpack.c.l.b16 %v201
    %v280 = vunpack.c.l.b16 %v202
    %v281 = vunpack.c.l.b16 %v203
    %v282 = vpack.c.b16 %v279, %v278
    %v283 = vpack.c.b16 %v281, %v280
    %v287 = vsel %vm250, %v270, 0
    %289 = vmatpush.bf16.msra.mxu0 0
    %290 = vmatpush.bf16.msra.mxu0 0
    %291 = vmatpush.bf16.msra.mxu0 0
    %292 = vmatpush.bf16.msra.mxu0 0
    %293 = vmatpush.bf16.msra.mxu0 0
    %294 = vmatpush.bf16.msra.mxu0 0
    %295 = vmatpush.bf16.msra.mxu0 %v283
    %296 = vmatpush.bf16.msra.mxu0 %v282
    %297 = vmatmul.bf16.gmra.mxu0 %v287
    %v298 = vpop.f32.mrf.mxu0
    %v299 = vadd.f32 %v272, %v298
    %v300 = vpop.f32.mrf.mxu0
    %301 = vdwg.mxu0
    %302 = vst [vmem:[#allocation2] sm:$0xff] %v299
    %s303 = scalar_lea.vmem [#allocation4], 8
    %v304 = vld [vmem:[%s303] sm:$0xff]
    %v305 = vpack.c.bf16 %v304, %v304
    %v307 = vsel %vm210, %v305, 0
    %309 = vmatpush.bf16.msra.mxu0 0
    %310 = vmatpush.bf16.msra.mxu0 0
    %311 = vmatpush.bf16.msra.mxu0 0
    %312 = vmatpush.bf16.msra.mxu0 0
    %313 = vmatpush.bf16.msra.mxu0 0
    %314 = vmatpush.bf16.msra.mxu0 0
    %315 = vmatpush.bf16.msra.mxu0 0
    %316 = vmatpush.bf16.msra.mxu0 %v216
    %317 = vmatmul.bf16.gmra.mxu0 %v307
    %v318 = vpop.f32.mrf.mxu0
    %v319 = vadd.f32 %v208, %v318
    %v320 = vpop.f32.mrf.mxu0
    %321 = vdwg.mxu0
    %vm322 = vcmp.ge.f32.partialorder %v319, 0.0
    %v323 = vmul.f32 %v319, 0.01
    %v324 = vsel %vm322, %v319, %v323
    %v325 = vpack.c.bf16 %v324, %v324
    %v327 = vsel %vm250, %v325, 0
    %329 = vmatpush.bf16.msra.mxu0 0
    %330 = vmatpush.bf16.msra.mxu0 0
    %331 = vmatpush.bf16.msra.mxu0 0
    %332 = vmatpush.bf16.msra.mxu0 0
    %333 = vmatpush.bf16.msra.mxu0 0
    %334 = vmatpush.bf16.msra.mxu0 0
    %335 = vmatpush.bf16.msra.mxu0 %v247
    %336 = vmatpush.bf16.msra.mxu0 %v246
    %337 = vmatmul.bf16.gmra.mxu0 %v327
    %v338 = vpop.f32.mrf.mxu0
    %v339 = vadd.f32 %v236, %v338
    %v340 = vpop.f32.mrf.mxu0
    %341 = vdwg.mxu0
    %vm342 = vcmp.ge.f32.partialorder %v339, 0.0
    %v343 = vmul.f32 %v339, 0.01
    %v344 = vsel %vm342, %v339, %v343
    %v345 = vpack.c.bf16 %v344, %v344
    %v347 = vsel %vm250, %v345, 0
    %349 = vmatpush.bf16.msra.mxu0 0
    %350 = vmatpush.bf16.msra.mxu0 0
    %351 = vmatpush.bf16.msra.mxu0 0
    %352 = vmatpush.bf16.msra.mxu0 0
    %353 = vmatpush.bf16.msra.mxu0 0
    %354 = vmatpush.bf16.msra.mxu0 0
    %355 = vmatpush.bf16.msra.mxu0 %v283
    %356 = vmatpush.bf16.msra.mxu0 %v282
    %357 = vmatmul.bf16.gmra.mxu0 %v347
    %v358 = vpop.f32.mrf.mxu0
    %v359 = vadd.f32 %v272, %v358
    %v360 = vpop.f32.mrf.mxu0
    %361 = vdwg.mxu0
    %s362 = scalar_lea.vmem [#allocation2], 8
    %363 = vst [vmem:[%s362] sm:$0xff] %v359
    %s364 = scalar_lea.vmem [#allocation4], 16
    %v365 = vld [vmem:[%s364] sm:$0xff]
    %v366 = vpack.c.bf16 %v365, %v365
    %v368 = vsel %vm210, %v366, 0
    %370 = vmatpush.bf16.msra.mxu0 0
    %371 = vmatpush.bf16.msra.mxu0 0
    %372 = vmatpush.bf16.msra.mxu0 0
    %373 = vmatpush.bf16.msra.mxu0 0
    %374 = vmatpush.bf16.msra.mxu0 0
    %375 = vmatpush.bf16.msra.mxu0 0
    %376 = vmatpush.bf16.msra.mxu0 0
    %377 = vmatpush.bf16.msra.mxu0 %v216
    %378 = vmatmul.bf16.gmra.mxu0 %v368
    %v379 = vpop.f32.mrf.mxu0
    %v380 = vadd.f32 %v208, %v379
    %v381 = vpop.f32.mrf.mxu0
    %382 = vdwg.mxu0
    %vm383 = vcmp.ge.f32.partialorder %v380, 0.0
    %v384 = vmul.f32 %v380, 0.01
    %v385 = vsel %vm383, %v380, %v384
    %v386 = vpack.c.bf16 %v385, %v385
    %v388 = vsel %vm250, %v386, 0
    %390 = vmatpush.bf16.msra.mxu0 0
    %391 = vmatpush.bf16.msra.mxu0 0
    %392 = vmatpush.bf16.msra.mxu0 0
    %393 = vmatpush.bf16.msra.mxu0 0
    %394 = vmatpush.bf16.msra.mxu0 0
    %395 = vmatpush.bf16.msra.mxu0 0
    %396 = vmatpush.bf16.msra.mxu0 %v247
    %397 = vmatpush.bf16.msra.mxu0 %v246
    %398 = vmatmul.bf16.gmra.mxu0 %v388
    %v399 = vpop.f32.mrf.mxu0
    %v400 = vadd.f32 %v236, %v399
    %v401 = vpop.f32.mrf.mxu0
    %402 = vdwg.mxu0
    %vm403 = vcmp.ge.f32.partialorder %v400, 0.0
    %v404 = vmul.f32 %v400, 0.01
    %v405 = vsel %vm403, %v400, %v404
    %v406 = vpack.c.bf16 %v405, %v405
    %v408 = vsel %vm250, %v406, 0
    %410 = vmatpush.bf16.msra.mxu0 0
    %411 = vmatpush.bf16.msra.mxu0 0
    %412 = vmatpush.bf16.msra.mxu0 0
    %413 = vmatpush.bf16.msra.mxu0 0
    %414 = vmatpush.bf16.msra.mxu0 0
    %415 = vmatpush.bf16.msra.mxu0 0
    %416 = vmatpush.bf16.msra.mxu0 %v283
    %417 = vmatpush.bf16.msra.mxu0 %v282
    %418 = vmatmul.bf16.gmra.mxu0 %v408
    %v419 = vpop.f32.mrf.mxu0
    %v420 = vadd.f32 %v272, %v419
    %v421 = vpop.f32.mrf.mxu0
    %422 = vdwg.mxu0
    %s423 = scalar_lea.vmem [#allocation2], 16
    %424 = vst [vmem:[%s423] sm:$0xff] %v420
    %s425 = scalar_lea.vmem [#allocation4], 24
    %v426 = vld [vmem:[%s425] sm:$0xff]
    %v427 = vpack.c.bf16 %v426, %v426
    %v429 = vsel %vm210, %v427, 0
    %431 = vmatpush.bf16.msra.mxu0 0
    %432 = vmatpush.bf16.msra.mxu0 0
    %433 = vmatpush.bf16.msra.mxu0 0
    %434 = vmatpush.bf16.msra.mxu0 0
    %435 = vmatpush.bf16.msra.mxu0 0
    %436 = vmatpush.bf16.msra.mxu0 0
    %437 = vmatpush.bf16.msra.mxu0 0
    %438 = vmatpush.bf16.msra.mxu0 %v216
    %439 = vmatmul.bf16.gmra.mxu0 %v429
    %v440 = vpop.f32.mrf.mxu0
    %v441 = vadd.f32 %v208, %v440
    %v442 = vpop.f32.mrf.mxu0
    %443 = vdwg.mxu0
    %vm444 = vcmp.ge.f32.partialorder %v441, 0.0
    %v445 = vmul.f32 %v441, 0.01
    %v446 = vsel %vm444, %v441, %v445
    %v447 = vpack.c.bf16 %v446, %v446
    %v449 = vsel %vm250, %v447, 0
    %451 = vmatpush.bf16.msra.mxu0 0
    %452 = vmatpush.bf16.msra.mxu0 0
    %453 = vmatpush.bf16.msra.mxu0 0
    %454 = vmatpush.bf16.msra.mxu0 0
    %455 = vmatpush.bf16.msra.mxu0 0
    %456 = vmatpush.bf16.msra.mxu0 0
    %457 = vmatpush.bf16.msra.mxu0 %v247
    %458 = vmatpush.bf16.msra.mxu0 %v246
    %459 = vmatmul.bf16.gmra.mxu0 %v449
    %v460 = vpop.f32.mrf.mxu0
    %v461 = vadd.f32 %v236, %v460
    %v462 = vpop.f32.mrf.mxu0
    %463 = vdwg.mxu0
    %vm464 = vcmp.ge.f32.partialorder %v461, 0.0
    %v465 = vmul.f32 %v461, 0.01
    %v466 = vsel %vm464, %v461, %v465
    %v467 = vpack.c.bf16 %v466, %v466
    %v469 = vsel %vm250, %v467, 0
    %471 = vmatpush.bf16.msra.mxu0 0
    %472 = vmatpush.bf16.msra.mxu0 0
    %473 = vmatpush.bf16.msra.mxu0 0
    %474 = vmatpush.bf16.msra.mxu0 0
    %475 = vmatpush.bf16.msra.mxu0 0
    %476 = vmatpush.bf16.msra.mxu0 0
    %477 = vmatpush.bf16.msra.mxu0 %v283
    %478 = vmatpush.bf16.msra.mxu0 %v282
    %479 = vmatmul.bf16.gmra.mxu0 %v469
    %v480 = vpop.f32.mrf.mxu0
    %v481 = vadd.f32 %v272, %v480
    %v482 = vpop.f32.mrf.mxu0
    %483 = vdwg.mxu0
    %s484 = scalar_lea.vmem [#allocation2], 24
    %485 = vst [vmem:[%s484] sm:$0xff] %v481
    %s486 = scalar_lea.vmem [#allocation4], 32
    %v487 = vld [vmem:[%s486] sm:$0xff]
    %v488 = vpack.c.bf16 %v487, %v487
    %v490 = vsel %vm210, %v488, 0
    %492 = vmatpush.bf16.msra.mxu0 0
    %493 = vmatpush.bf16.msra.mxu0 0
    %494 = vmatpush.bf16.msra.mxu0 0
    %495 = vmatpush.bf16.msra.mxu0 0
    %496 = vmatpush.bf16.msra.mxu0 0
    %497 = vmatpush.bf16.msra.mxu0 0
    %498 = vmatpush.bf16.msra.mxu0 0
    %499 = vmatpush.bf16.msra.mxu0 %v216
    %500 = vmatmul.bf16.gmra.mxu0 %v490
    %v501 = vpop.f32.mrf.mxu0
    %v502 = vadd.f32 %v208, %v501
    %v503 = vpop.f32.mrf.mxu0
    %504 = vdwg.mxu0
    %vm505 = vcmp.ge.f32.partialorder %v502, 0.0
    %v506 = vmul.f32 %v502, 0.01
    %v507 = vsel %vm505, %v502, %v506
    %v508 = vpack.c.bf16 %v507, %v507
    %v510 = vsel %vm250, %v508, 0
    %512 = vmatpush.bf16.msra.mxu0 0
    %513 = vmatpush.bf16.msra.mxu0 0
    %514 = vmatpush.bf16.msra.mxu0 0
    %515 = vmatpush.bf16.msra.mxu0 0
    %516 = vmatpush.bf16.msra.mxu0 0
    %517 = vmatpush.bf16.msra.mxu0 0
    %518 = vmatpush.bf16.msra.mxu0 %v247
    %519 = vmatpush.bf16.msra.mxu0 %v246
    %520 = vmatmul.bf16.gmra.mxu0 %v510
    %v521 = vpop.f32.mrf.mxu0
    %v522 = vadd.f32 %v236, %v521
    %v523 = vpop.f32.mrf.mxu0
    %524 = vdwg.mxu0
    %vm525 = vcmp.ge.f32.partialorder %v522, 0.0
    %v526 = vmul.f32 %v522, 0.01
    %v527 = vsel %vm525, %v522, %v526
    %v528 = vpack.c.bf16 %v527, %v527
    %v530 = vsel %vm250, %v528, 0
    %532 = vmatpush.bf16.msra.mxu0 0
    %533 = vmatpush.bf16.msra.mxu0 0
    %534 = vmatpush.bf16.msra.mxu0 0
    %535 = vmatpush.bf16.msra.mxu0 0
    %536 = vmatpush.bf16.msra.mxu0 0
    %537 = vmatpush.bf16.msra.mxu0 0
    %538 = vmatpush.bf16.msra.mxu0 %v283
    %539 = vmatpush.bf16.msra.mxu0 %v282
    %540 = vmatmul.bf16.gmra.mxu0 %v530
    %v541 = vpop.f32.mrf.mxu0
    %v542 = vadd.f32 %v272, %v541
    %v543 = vpop.f32.mrf.mxu0
    %544 = vdwg.mxu0
    %s545 = scalar_lea.vmem [#allocation2], 32
    %546 = vst [vmem:[%s545] sm:$0xff] %v542
    %s547 = scalar_lea.vmem [#allocation4], 40
    %v548 = vld [vmem:[%s547] sm:$0xff]
    %v549 = vpack.c.bf16 %v548, %v548
    %v551 = vsel %vm210, %v549, 0
    %553 = vmatpush.bf16.msra.mxu0 0
    %554 = vmatpush.bf16.msra.mxu0 0
    %555 = vmatpush.bf16.msra.mxu0 0
    %556 = vmatpush.bf16.msra.mxu0 0
    %557 = vmatpush.bf16.msra.mxu0 0
    %558 = vmatpush.bf16.msra.mxu0 0
    %559 = vmatpush.bf16.msra.mxu0 0
    %560 = vmatpush.bf16.msra.mxu0 %v216
    %561 = vmatmul.bf16.gmra.mxu0 %v551
    %v562 = vpop.f32.mrf.mxu0
    %v563 = vadd.f32 %v208, %v562
    %v564 = vpop.f32.mrf.mxu0
    %565 = vdwg.mxu0
    %vm566 = vcmp.ge.f32.partialorder %v563, 0.0
    %v567 = vmul.f32 %v563, 0.01
    %v568 = vsel %vm566, %v563, %v567
    %v569 = vpack.c.bf16 %v568, %v568
    %v571 = vsel %vm250, %v569, 0
    %573 = vmatpush.bf16.msra.mxu0 0
    %574 = vmatpush.bf16.msra.mxu0 0
    %575 = vmatpush.bf16.msra.mxu0 0
    %576 = vmatpush.bf16.msra.mxu0 0
    %577 = vmatpush.bf16.msra.mxu0 0
    %578 = vmatpush.bf16.msra.mxu0 0
    %579 = vmatpush.bf16.msra.mxu0 %v247
    %580 = vmatpush.bf16.msra.mxu0 %v246
    %581 = vmatmul.bf16.gmra.mxu0 %v571
    %v582 = vpop.f32.mrf.mxu0
    %v583 = vadd.f32 %v236, %v582
    %v584 = vpop.f32.mrf.mxu0
    %585 = vdwg.mxu0
    %vm586 = vcmp.ge.f32.partialorder %v583, 0.0
    %v587 = vmul.f32 %v583, 0.01
    %v588 = vsel %vm586, %v583, %v587
    %v589 = vpack.c.bf16 %v588, %v588
    %v591 = vsel %vm250, %v589, 0
    %593 = vmatpush.bf16.msra.mxu0 0
    %594 = vmatpush.bf16.msra.mxu0 0
    %595 = vmatpush.bf16.msra.mxu0 0
    %596 = vmatpush.bf16.msra.mxu0 0
    %597 = vmatpush.bf16.msra.mxu0 0
    %598 = vmatpush.bf16.msra.mxu0 0
    %599 = vmatpush.bf16.msra.mxu0 %v283
    %600 = vmatpush.bf16.msra.mxu0 %v282
    %601 = vmatmul.bf16.gmra.mxu0 %v591
    %v602 = vpop.f32.mrf.mxu0
    %v603 = vadd.f32 %v272, %v602
    %v604 = vpop.f32.mrf.mxu0
    %605 = vdwg.mxu0
    %s606 = scalar_lea.vmem [#allocation2], 40
    %607 = vst [vmem:[%s606] sm:$0xff] %v603
    %s608 = scalar_lea.vmem [#allocation4], 48
    %v609 = vld [vmem:[%s608] sm:$0xff]
    %v610 = vpack.c.bf16 %v609, %v609
    %v612 = vsel %vm210, %v610, 0
    %614 = vmatpush.bf16.msra.mxu0 0
    %615 = vmatpush.bf16.msra.mxu0 0
    %616 = vmatpush.bf16.msra.mxu0 0
    %617 = vmatpush.bf16.msra.mxu0 0
    %618 = vmatpush.bf16.msra.mxu0 0
    %619 = vmatpush.bf16.msra.mxu0 0
    %620 = vmatpush.bf16.msra.mxu0 0
    %621 = vmatpush.bf16.msra.mxu0 %v216
    %622 = vmatmul.bf16.gmra.mxu0 %v612
    %v623 = vpop.f32.mrf.mxu0
    %v624 = vadd.f32 %v208, %v623
    %v625 = vpop.f32.mrf.mxu0
    %626 = vdwg.mxu0
    %vm627 = vcmp.ge.f32.partialorder %v624, 0.0
    %v628 = vmul.f32 %v624, 0.01
    %v629 = vsel %vm627, %v624, %v628
    %v630 = vpack.c.bf16 %v629, %v629
    %v632 = vsel %vm250, %v630, 0
    %634 = vmatpush.bf16.msra.mxu0 0
    %635 = vmatpush.bf16.msra.mxu0 0
    %636 = vmatpush.bf16.msra.mxu0 0
    %637 = vmatpush.bf16.msra.mxu0 0
    %638 = vmatpush.bf16.msra.mxu0 0
    %639 = vmatpush.bf16.msra.mxu0 0
    %640 = vmatpush.bf16.msra.mxu0 %v247
    %641 = vmatpush.bf16.msra.mxu0 %v246
    %642 = vmatmul.bf16.gmra.mxu0 %v632
    %v643 = vpop.f32.mrf.mxu0
    %v644 = vadd.f32 %v236, %v643
    %v645 = vpop.f32.mrf.mxu0
    %646 = vdwg.mxu0
    %vm647 = vcmp.ge.f32.partialorder %v644, 0.0
    %v648 = vmul.f32 %v644, 0.01
    %v649 = vsel %vm647, %v644, %v648
    %v650 = vpack.c.bf16 %v649, %v649
    %v652 = vsel %vm250, %v650, 0
    %654 = vmatpush.bf16.msra.mxu0 0
    %655 = vmatpush.bf16.msra.mxu0 0
    %656 = vmatpush.bf16.msra.mxu0 0
    %657 = vmatpush.bf16.msra.mxu0 0
    %658 = vmatpush.bf16.msra.mxu0 0
    %659 = vmatpush.bf16.msra.mxu0 0
    %660 = vmatpush.bf16.msra.mxu0 %v283
    %661 = vmatpush.bf16.msra.mxu0 %v282
    %662 = vmatmul.bf16.gmra.mxu0 %v652
    %v663 = vpop.f32.mrf.mxu0
    %v664 = vadd.f32 %v272, %v663
    %v665 = vpop.f32.mrf.mxu0
    %666 = vdwg.mxu0
    %s667 = scalar_lea.vmem [#allocation2], 48
    %668 = vst [vmem:[%s667] sm:$0xff] %v664
    %s669 = scalar_lea.vmem [#allocation4], 56
    %v670 = vld [vmem:[%s669] sm:$0xff]
    %v671 = vpack.c.bf16 %v670, %v670
    %v673 = vsel %vm210, %v671, 0
    %675 = vmatpush.bf16.msra.mxu0 0
    %676 = vmatpush.bf16.msra.mxu0 0
    %677 = vmatpush.bf16.msra.mxu0 0
    %678 = vmatpush.bf16.msra.mxu0 0
    %679 = vmatpush.bf16.msra.mxu0 0
    %680 = vmatpush.bf16.msra.mxu0 0
    %681 = vmatpush.bf16.msra.mxu0 0
    %682 = vmatpush.bf16.msra.mxu0 %v216
    %683 = vmatmul.bf16.gmra.mxu0 %v673
    %v684 = vpop.f32.mrf.mxu0
    %v685 = vadd.f32 %v208, %v684
    %v686 = vpop.f32.mrf.mxu0
    %687 = vdwg.mxu0
    %vm688 = vcmp.ge.f32.partialorder %v685, 0.0
    %v689 = vmul.f32 %v685, 0.01
    %v690 = vsel %vm688, %v685, %v689
    %v691 = vpack.c.bf16 %v690, %v690
    %v693 = vsel %vm250, %v691, 0
    %695 = vmatpush.bf16.msra.mxu0 0
    %696 = vmatpush.bf16.msra.mxu0 0
    %697 = vmatpush.bf16.msra.mxu0 0
    %698 = vmatpush.bf16.msra.mxu0 0
    %699 = vmatpush.bf16.msra.mxu0 0
    %700 = vmatpush.bf16.msra.mxu0 0
    %701 = vmatpush.bf16.msra.mxu0 %v247
    %702 = vmatpush.bf16.msra.mxu0 %v246
    %703 = vmatmul.bf16.gmra.mxu0 %v693
    %v704 = vpop.f32.mrf.mxu0
    %v705 = vadd.f32 %v236, %v704
    %v706 = vpop.f32.mrf.mxu0
    %707 = vdwg.mxu0
    %vm708 = vcmp.ge.f32.partialorder %v705, 0.0
    %v709 = vmul.f32 %v705, 0.01
    %v710 = vsel %vm708, %v705, %v709
    %v711 = vpack.c.bf16 %v710, %v710
    %v713 = vsel %vm250, %v711, 0
    %715 = vmatpush.bf16.msra.mxu0 0
    %716 = vmatpush.bf16.msra.mxu0 0
    %717 = vmatpush.bf16.msra.mxu0 0
    %718 = vmatpush.bf16.msra.mxu0 0
    %719 = vmatpush.bf16.msra.mxu0 0
    %720 = vmatpush.bf16.msra.mxu0 0
    %721 = vmatpush.bf16.msra.mxu0 %v283
    %722 = vmatpush.bf16.msra.mxu0 %v282
    %723 = vmatmul.bf16.gmra.mxu0 %v713
    %v724 = vpop.f32.mrf.mxu0
    %v725 = vadd.f32 %v272, %v724
    %v726 = vpop.f32.mrf.mxu0
    %727 = vdwg.mxu0
    %s728 = scalar_lea.vmem [#allocation2], 56
    %729 = vst [vmem:[%s728] sm:$0xff] %v725
    %v730 = vld [vmem:[#allocation12] sm:$0xff]
    %v731 = vld [vmem:[#allocation12 + $0x8] sm:$0xff]
    %v732 = vld [vmem:[#allocation12 + $0x10] sm:$0xff]
    %v733 = vld [vmem:[#allocation12 + $0x18] sm:$0xff]
    %734 = vst [vmem:[#allocation3] sm:$0xff] 0.0
    %v735 = vld [vmem:[#allocation2] sm:$0xff]
    %v737 = vsel %vm250, 0.0, 0
    %739 = vmatpush.msra.mxu0 0.0
    %740 = vmatpush.msra.mxu0 0.0
    %741 = vmatpush.msra.mxu0 0.0
    %742 = vmatpush.msra.mxu0 0.0
    %743 = vmatpush.msra.mxu0 0.0
    %744 = vmatpush.msra.mxu0 0.0
    %745 = vmatpush.msra.mxu0 0.0
    %746 = vmatpush.msra.mxu0 0.0
    %747 = vmatpush.msra.mxu0 0.0
    %748 = vmatpush.msra.mxu0 0.0
    %749 = vmatpush.msra.mxu0 0.0
    %750 = vmatpush.msra.mxu0 0.0
    %751 = vmatpush.msra.mxu0 %v733
    %752 = vmatpush.msra.mxu0 %v732
    %753 = vmatpush.msra.mxu0 %v731
    %754 = vmatpush.msra.mxu0 %v730
    %755 = vmatmul.f32.gmra.mxu0 %v737
    %v756 = vpop.f32.mrf.mxu0
    %v757 = vadd.f32 0.0, %v756
    %758 = vdwg.mxu0
    %v759 = vadd.f32 %v735, %v757
    %v760 = vtanh.pop %v759
    %v761 = vadd.f32 %v760, 1.0
    %v762 = vmul.f32 %v761, 0.0
    %764 = vrot.lane.b32.xlu0 %v760, 64
    %v765 = vpop.permute.xlu0 %764
    %v767 = vmul.f32 %v761, %v765
    %769 = vrot.lane.b32.xlu0 %v767, 32
    %v770 = vpop.permute.xlu0 %769
    %v772 = vadd.f32 %v762, %v770
    %v773 = vmul.f32 %v772, 0.5
    %v774 = vmul.f32 %v761, 0.5
    %v775 = vtanh.pop %v773
    %777 = vrot.lane.b32.xlu0 %v775, 64
    %v778 = vpop.permute.xlu0 %777
    %v780 = vmul.f32 %v774, %v778
    %v781 = vld [vmem:[#allocation3] sm:$0xff]
    %v782 = vpack.c.bf16 %v780, %v780
    %v783 = vld [vmem:[#allocation13] sm:$0xf]
    %v784 = vld [vmem:[#allocation13 + $0x4] sm:$0xf]
    %v785 = vld [vmem:[#allocation13 + $0x8] sm:$0xf]
    %v786 = vld [vmem:[#allocation13 + $0xc] sm:$0xf]
    %788 = vrot.lane.b32.xlu0 %v782, 32
    %v789 = vpop.permute.xlu0 %788
    %v794 = vunpack.c.l.b16 %v783
    %v795 = vunpack.c.l.b16 %v784
    %v796 = vunpack.c.l.b16 %v785
    %v797 = vunpack.c.l.b16 %v786
    %v798 = vpack.c.b16 %v795, %v794
    %v799 = vpack.c.b16 %v797, %v796
    %v803 = vsel %vm250, %v789, 0
    %805 = vmatpush.bf16.msra.mxu0 0
    %806 = vmatpush.bf16.msra.mxu0 0
    %807 = vmatpush.bf16.msra.mxu0 0
    %808 = vmatpush.bf16.msra.mxu0 0
    %809 = vmatpush.bf16.msra.mxu0 0
    %810 = vmatpush.bf16.msra.mxu0 0
    %811 = vmatpush.bf16.msra.mxu0 %v799
    %812 = vmatpush.bf16.msra.mxu0 %v798
    %813 = vmatmul.bf16.gmra.mxu0 %v803
    %v814 = vpop.f32.mrf.mxu0
    %v815 = vadd.f32 0.0, %v814
    %v816 = vpop.f32.mrf.mxu0
    %817 = vdwg.mxu0
    %v818 = vadd.f32 %v781, %v815
    %819 = vst [vmem:[#allocation3] sm:$0xff] %v818
    %v820 = vld [vmem:[%s362] sm:$0xff]
    %822 = vrot.lane.b32.xlu0 %v780, 32
    %v823 = vpop.permute.xlu0 %822
    %v824 = vsel %vm250, %v823, 0
    %826 = vmatpush.msra.mxu0 0.0
    %827 = vmatpush.msra.mxu0 0.0
    %828 = vmatpush.msra.mxu0 0.0
    %829 = vmatpush.msra.mxu0 0.0
    %830 = vmatpush.msra.mxu0 0.0
    %831 = vmatpush.msra.mxu0 0.0
    %832 = vmatpush.msra.mxu0 0.0
    %833 = vmatpush.msra.mxu0 0.0
    %834 = vmatpush.msra.mxu0 0.0
    %835 = vmatpush.msra.mxu0 0.0
    %836 = vmatpush.msra.mxu0 0.0
    %837 = vmatpush.msra.mxu0 0.0
    %838 = vmatpush.msra.mxu0 %v733
    %839 = vmatpush.msra.mxu0 %v732
    %840 = vmatpush.msra.mxu0 %v731
    %841 = vmatpush.msra.mxu0 %v730
    %842 = vmatmul.f32.gmra.mxu0 %v824
    %v843 = vpop.f32.mrf.mxu0
    %v844 = vadd.f32 0.0, %v843
    %845 = vdwg.mxu0
    %v846 = vadd.f32 %v820, %v844
    %v847 = vtanh.pop %v846
    %v848 = vadd.f32 %v847, 1.0
    %v849 = vmul.f32 %v848, %v773
    %851 = vrot.lane.b32.xlu0 %v847, 64
    %v852 = vpop.permute.xlu0 %851
    %v854 = vmul.f32 %v848, %v852
    %856 = vrot.lane.b32.xlu0 %v854, 32
    %v857 = vpop.permute.xlu0 %856
    %v859 = vadd.f32 %v849, %v857
    %v860 = vmul.f32 %v859, 0.5
    %v861 = vmul.f32 %v848, 0.5
    %v862 = vtanh.pop %v860
    %864 = vrot.lane.b32.xlu0 %v862, 64
    %v865 = vpop.permute.xlu0 %864
    %v867 = vmul.f32 %v861, %v865
    %v868 = vld [vmem:[#allocation3] sm:$0xff]
    %v869 = vpack.c.bf16 %v867, %v867
    %v870 = vld [vmem:[#allocation13 + $0x10] sm:$0xf]
    %v871 = vld [vmem:[#allocation13 + $0x14] sm:$0xf]
    %v872 = vld [vmem:[#allocation13 + $0x18] sm:$0xf]
    %v873 = vld [vmem:[#allocation13 + $0x1c] sm:$0xf]
    %875 = vrot.lane.b32.xlu0 %v869, 32
    %v876 = vpop.permute.xlu0 %875
    %v881 = vunpack.c.l.b16 %v870
    %v882 = vunpack.c.l.b16 %v871
    %v883 = vunpack.c.l.b16 %v872
    %v884 = vunpack.c.l.b16 %v873
    %v885 = vpack.c.b16 %v882, %v881
    %v886 = vpack.c.b16 %v884, %v883
    %v890 = vsel %vm250, %v876, 0
    %892 = vmatpush.bf16.msra.mxu0 0
    %893 = vmatpush.bf16.msra.mxu0 0
    %894 = vmatpush.bf16.msra.mxu0 0
    %895 = vmatpush.bf16.msra.mxu0 0
    %896 = vmatpush.bf16.msra.mxu0 0
    %897 = vmatpush.bf16.msra.mxu0 0
    %898 = vmatpush.bf16.msra.mxu0 %v886
    %899 = vmatpush.bf16.msra.mxu0 %v885
    %900 = vmatmul.bf16.gmra.mxu0 %v890
    %v901 = vpop.f32.mrf.mxu0
    %v902 = vadd.f32 0.0, %v901
    %v903 = vpop.f32.mrf.mxu0
    %904 = vdwg.mxu0
    %v905 = vadd.f32 %v868, %v902
    %906 = vst [vmem:[#allocation3] sm:$0xff] %v905
    %v907 = vld [vmem:[%s423] sm:$0xff]
    %909 = vrot.lane.b32.xlu0 %v867, 32
    %v910 = vpop.permute.xlu0 %909
    %v911 = vsel %vm250, %v910, 0
    %913 = vmatpush.msra.mxu0 0.0
    %914 = vmatpush.msra.mxu0 0.0
    %915 = vmatpush.msra.mxu0 0.0
    %916 = vmatpush.msra.mxu0 0.0
    %917 = vmatpush.msra.mxu0 0.0
    %918 = vmatpush.msra.mxu0 0.0
    %919 = vmatpush.msra.mxu0 0.0
    %920 = vmatpush.msra.mxu0 0.0
    %921 = vmatpush.msra.mxu0 0.0
    %922 = vmatpush.msra.mxu0 0.0
    %923 = vmatpush.msra.mxu0 0.0
    %924 = vmatpush.msra.mxu0 0.0
    %925 = vmatpush.msra.mxu0 %v733
    %926 = vmatpush.msra.mxu0 %v732
    %927 = vmatpush.msra.mxu0 %v731
    %928 = vmatpush.msra.mxu0 %v730
    %929 = vmatmul.f32.gmra.mxu0 %v911
    %v930 = vpop.f32.mrf.mxu0
    %v931 = vadd.f32 0.0, %v930
    %932 = vdwg.mxu0
    %v933 = vadd.f32 %v907, %v931
    %v934 = vtanh.pop %v933
    %v935 = vadd.f32 %v934, 1.0
    %v936 = vmul.f32 %v935, %v860
    %938 = vrot.lane.b32.xlu0 %v934, 64
    %v939 = vpop.permute.xlu0 %938
    %v941 = vmul.f32 %v935, %v939
    %943 = vrot.lane.b32.xlu0 %v941, 32
    %v944 = vpop.permute.xlu0 %943
    %v946 = vadd.f32 %v936, %v944
    %v947 = vmul.f32 %v946, 0.5
    %v948 = vmul.f32 %v935, 0.5
    %v949 = vtanh.pop %v947
    %951 = vrot.lane.b32.xlu0 %v949, 64
    %v952 = vpop.permute.xlu0 %951
    %v954 = vmul.f32 %v948, %v952
    %v955 = vld [vmem:[#allocation3] sm:$0xff]
    %v956 = vpack.c.bf16 %v954, %v954
    %v957 = vld [vmem:[#allocation13 + $0x20] sm:$0xf]
    %v958 = vld [vmem:[#allocation13 + $0x24] sm:$0xf]
    %v959 = vld [vmem:[#allocation13 + $0x28] sm:$0xf]
    %v960 = vld [vmem:[#allocation13 + $0x2c] sm:$0xf]
    %962 = vrot.lane.b32.xlu0 %v956, 32
    %v963 = vpop.permute.xlu0 %962
    %v968 = vunpack.c.l.b16 %v957
    %v969 = vunpack.c.l.b16 %v958
    %v970 = vunpack.c.l.b16 %v959
    %v971 = vunpack.c.l.b16 %v960
    %v972 = vpack.c.b16 %v969, %v968
    %v973 = vpack.c.b16 %v971, %v970
    %v977 = vsel %vm250, %v963, 0
    %979 = vmatpush.bf16.msra.mxu0 0
    %980 = vmatpush.bf16.msra.mxu0 0
    %981 = vmatpush.bf16.msra.mxu0 0
    %982 = vmatpush.bf16.msra.mxu0 0
    %983 = vmatpush.bf16.msra.mxu0 0
    %984 = vmatpush.bf16.msra.mxu0 0
    %985 = vmatpush.bf16.msra.mxu0 %v973
    %986 = vmatpush.bf16.msra.mxu0 %v972
    %987 = vmatmul.bf16.gmra.mxu0 %v977
    %v988 = vpop.f32.mrf.mxu0
    %v989 = vadd.f32 0.0, %v988
    %v990 = vpop.f32.mrf.mxu0
    %991 = vdwg.mxu0
    %v992 = vadd.f32 %v955, %v989
    %993 = vst [vmem:[#allocation3] sm:$0xff] %v992
    %v994 = vld [vmem:[%s484] sm:$0xff]
    %996 = vrot.lane.b32.xlu0 %v954, 32
    %v997 = vpop.permute.xlu0 %996
    %v998 = vsel %vm250, %v997, 0
    %1000 = vmatpush.msra.mxu0 0.0
    %1001 = vmatpush.msra.mxu0 0.0
    %1002 = vmatpush.msra.mxu0 0.0
    %1003 = vmatpush.msra.mxu0 0.0
    %1004 = vmatpush.msra.mxu0 0.0
    %1005 = vmatpush.msra.mxu0 0.0
    %1006 = vmatpush.msra.mxu0 0.0
    %1007 = vmatpush.msra.mxu0 0.0
    %1008 = vmatpush.msra.mxu0 0.0
    %1009 = vmatpush.msra.mxu0 0.0
    %1010 = vmatpush.msra.mxu0 0.0
    %1011 = vmatpush.msra.mxu0 0.0
    %1012 = vmatpush.msra.mxu0 %v733
    %1013 = vmatpush.msra.mxu0 %v732
    %1014 = vmatpush.msra.mxu0 %v731
    %1015 = vmatpush.msra.mxu0 %v730
    %1016 = vmatmul.f32.gmra.mxu0 %v998
    %v1017 = vpop.f32.mrf.mxu0
    %v1018 = vadd.f32 0.0, %v1017
    %1019 = vdwg.mxu0
    %v1020 = vadd.f32 %v994, %v1018
    %v1021 = vtanh.pop %v1020
    %v1022 = vadd.f32 %v1021, 1.0
    %v1023 = vmul.f32 %v1022, %v947
    %1025 = vrot.lane.b32.xlu0 %v1021, 64
    %v1026 = vpop.permute.xlu0 %1025
    %v1028 = vmul.f32 %v1022, %v1026
    %1030 = vrot.lane.b32.xlu0 %v1028, 32
    %v1031 = vpop.permute.xlu0 %1030
    %v1033 = vadd.f32 %v1023, %v1031
    %v1034 = vmul.f32 %v1033, 0.5
    %v1035 = vmul.f32 %v1022, 0.5
    %v1036 = vtanh.pop %v1034
    %1038 = vrot.lane.b32.xlu0 %v1036, 64
    %v1039 = vpop.permute.xlu0 %1038
    %v1041 = vmul.f32 %v1035, %v1039
    %v1042 = vld [vmem:[#allocation3] sm:$0xff]
    %v1043 = vpack.c.bf16 %v1041, %v1041
    %v1044 = vld [vmem:[#allocation13 + $0x30] sm:$0xf]
    %v1045 = vld [vmem:[#allocation13 + $0x34] sm:$0xf]
    %v1046 = vld [vmem:[#allocation13 + $0x38] sm:$0xf]
    %v1047 = vld [vmem:[#allocation13 + $0x3c] sm:$0xf]
    %1049 = vrot.lane.b32.xlu0 %v1043, 32
    %v1050 = vpop.permute.xlu0 %1049
    %v1055 = vunpack.c.l.b16 %v1044
    %v1056 = vunpack.c.l.b16 %v1045
    %v1057 = vunpack.c.l.b16 %v1046
    %v1058 = vunpack.c.l.b16 %v1047
    %v1059 = vpack.c.b16 %v1056, %v1055
    %v1060 = vpack.c.b16 %v1058, %v1057
    %v1064 = vsel %vm250, %v1050, 0
    %1066 = vmatpush.bf16.msra.mxu0 0
    %1067 = vmatpush.bf16.msra.mxu0 0
    %1068 = vmatpush.bf16.msra.mxu0 0
    %1069 = vmatpush.bf16.msra.mxu0 0
    %1070 = vmatpush.bf16.msra.mxu0 0
    %1071 = vmatpush.bf16.msra.mxu0 0
    %1072 = vmatpush.bf16.msra.mxu0 %v1060
    %1073 = vmatpush.bf16.msra.mxu0 %v1059
    %1074 = vmatmul.bf16.gmra.mxu0 %v1064
    %v1075 = vpop.f32.mrf.mxu0
    %v1076 = vadd.f32 0.0, %v1075
    %v1077 = vpop.f32.mrf.mxu0
    %1078 = vdwg.mxu0
    %v1079 = vadd.f32 %v1042, %v1076
    %1080 = vst [vmem:[#allocation3] sm:$0xff] %v1079
    %v1081 = vld [vmem:[%s545] sm:$0xff]
    %1083 = vrot.lane.b32.xlu0 %v1041, 32
    %v1084 = vpop.permute.xlu0 %1083
    %v1085 = vsel %vm250, %v1084, 0
    %1087 = vmatpush.msra.mxu0 0.0
    %1088 = vmatpush.msra.mxu0 0.0
    %1089 = vmatpush.msra.mxu0 0.0
    %1090 = vmatpush.msra.mxu0 0.0
    %1091 = vmatpush.msra.mxu0 0.0
    %1092 = vmatpush.msra.mxu0 0.0
    %1093 = vmatpush.msra.mxu0 0.0
    %1094 = vmatpush.msra.mxu0 0.0
    %1095 = vmatpush.msra.mxu0 0.0
    %1096 = vmatpush.msra.mxu0 0.0
    %1097 = vmatpush.msra.mxu0 0.0
    %1098 = vmatpush.msra.mxu0 0.0
    %1099 = vmatpush.msra.mxu0 %v733
    %1100 = vmatpush.msra.mxu0 %v732
    %1101 = vmatpush.msra.mxu0 %v731
    %1102 = vmatpush.msra.mxu0 %v730
    %1103 = vmatmul.f32.gmra.mxu0 %v1085
    %v1104 = vpop.f32.mrf.mxu0
    %v1105 = vadd.f32 0.0, %v1104
    %1106 = vdwg.mxu0
    %v1107 = vadd.f32 %v1081, %v1105
    %v1108 = vtanh.pop %v1107
    %v1109 = vadd.f32 %v1108, 1.0
    %v1110 = vmul.f32 %v1109, %v1034
    %1112 = vrot.lane.b32.xlu0 %v1108, 64
    %v1113 = vpop.permute.xlu0 %1112
    %v1115 = vmul.f32 %v1109, %v1113
    %1117 = vrot.lane.b32.xlu0 %v1115, 32
    %v1118 = vpop.permute.xlu0 %1117
    %v1120 = vadd.f32 %v1110, %v1118
    %v1121 = vmul.f32 %v1120, 0.5
    %v1122 = vmul.f32 %v1109, 0.5
    %v1123 = vtanh.pop %v1121
    %1125 = vrot.lane.b32.xlu0 %v1123, 64
    %v1126 = vpop.permute.xlu0 %1125
    %v1128 = vmul.f32 %v1122, %v1126
    %v1129 = vld [vmem:[#allocation3] sm:$0xff]
    %v1130 = vpack.c.bf16 %v1128, %v1128
    %v1131 = vld [vmem:[#allocation13 + $0x40] sm:$0xf]
    %v1132 = vld [vmem:[#allocation13 + $0x44] sm:$0xf]
    %v1133 = vld [vmem:[#allocation13 + $0x48] sm:$0xf]
    %v1134 = vld [vmem:[#allocation13 + $0x4c] sm:$0xf]
    %1136 = vrot.lane.b32.xlu0 %v1130, 32
    %v1137 = vpop.permute.xlu0 %1136
    %v1142 = vunpack.c.l.b16 %v1131
    %v1143 = vunpack.c.l.b16 %v1132
    %v1144 = vunpack.c.l.b16 %v1133
    %v1145 = vunpack.c.l.b16 %v1134
    %v1146 = vpack.c.b16 %v1143, %v1142
    %v1147 = vpack.c.b16 %v1145, %v1144
    %v1151 = vsel %vm250, %v1137, 0
    %1153 = vmatpush.bf16.msra.mxu0 0
    %1154 = vmatpush.bf16.msra.mxu0 0
    %1155 = vmatpush.bf16.msra.mxu0 0
    %1156 = vmatpush.bf16.msra.mxu0 0
    %1157 = vmatpush.bf16.msra.mxu0 0
    %1158 = vmatpush.bf16.msra.mxu0 0
    %1159 = vmatpush.bf16.msra.mxu0 %v1147
    %1160 = vmatpush.bf16.msra.mxu0 %v1146
    %1161 = vmatmul.bf16.gmra.mxu0 %v1151
    %v1162 = vpop.f32.mrf.mxu0
    %v1163 = vadd.f32 0.0, %v1162
    %v1164 = vpop.f32.mrf.mxu0
    %1165 = vdwg.mxu0
    %v1166 = vadd.f32 %v1129, %v1163
    %1167 = vst [vmem:[#allocation3] sm:$0xff] %v1166
    %v1168 = vld [vmem:[%s606] sm:$0xff]
    %1170 = vrot.lane.b32.xlu0 %v1128, 32
    %v1171 = vpop.permute.xlu0 %1170
    %v1172 = vsel %vm250, %v1171, 0
    %1174 = vmatpush.msra.mxu0 0.0
    %1175 = vmatpush.msra.mxu0 0.0
    %1176 = vmatpush.msra.mxu0 0.0
    %1177 = vmatpush.msra.mxu0 0.0
    %1178 = vmatpush.msra.mxu0 0.0
    %1179 = vmatpush.msra.mxu0 0.0
    %1180 = vmatpush.msra.mxu0 0.0
    %1181 = vmatpush.msra.mxu0 0.0
    %1182 = vmatpush.msra.mxu0 0.0
    %1183 = vmatpush.msra.mxu0 0.0
    %1184 = vmatpush.msra.mxu0 0.0
    %1185 = vmatpush.msra.mxu0 0.0
    %1186 = vmatpush.msra.mxu0 %v733
    %1187 = vmatpush.msra.mxu0 %v732
    %1188 = vmatpush.msra.mxu0 %v731
    %1189 = vmatpush.msra.mxu0 %v730
    %1190 = vmatmul.f32.gmra.mxu0 %v1172
    %v1191 = vpop.f32.mrf.mxu0
    %v1192 = vadd.f32 0.0, %v1191
    %1193 = vdwg.mxu0
    %v1194 = vadd.f32 %v1168, %v1192
    %v1195 = vtanh.pop %v1194
    %v1196 = vadd.f32 %v1195, 1.0
    %v1197 = vmul.f32 %v1196, %v1121
    %1199 = vrot.lane.b32.xlu0 %v1195, 64
    %v1200 = vpop.permute.xlu0 %1199
    %v1202 = vmul.f32 %v1196, %v1200
    %1204 = vrot.lane.b32.xlu0 %v1202, 32
    %v1205 = vpop.permute.xlu0 %1204
    %v1207 = vadd.f32 %v1197, %v1205
    %v1208 = vmul.f32 %v1207, 0.5
    %v1209 = vmul.f32 %v1196, 0.5
    %v1210 = vtanh.pop %v1208
    %1212 = vrot.lane.b32.xlu0 %v1210, 64
    %v1213 = vpop.permute.xlu0 %1212
    %v1215 = vmul.f32 %v1209, %v1213
    %v1216 = vld [vmem:[#allocation3] sm:$0xff]
    %v1217 = vpack.c.bf16 %v1215, %v1215
    %v1218 = vld [vmem:[#allocation13 + $0x50] sm:$0xf]
    %v1219 = vld [vmem:[#allocation13 + $0x54] sm:$0xf]
    %v1220 = vld [vmem:[#allocation13 + $0x58] sm:$0xf]
    %v1221 = vld [vmem:[#allocation13 + $0x5c] sm:$0xf]
    %1223 = vrot.lane.b32.xlu0 %v1217, 32
    %v1224 = vpop.permute.xlu0 %1223
    %v1229 = vunpack.c.l.b16 %v1218
    %v1230 = vunpack.c.l.b16 %v1219
    %v1231 = vunpack.c.l.b16 %v1220
    %v1232 = vunpack.c.l.b16 %v1221
    %v1233 = vpack.c.b16 %v1230, %v1229
    %v1234 = vpack.c.b16 %v1232, %v1231
    %v1238 = vsel %vm250, %v1224, 0
    %1240 = vmatpush.bf16.msra.mxu0 0
    %1241 = vmatpush.bf16.msra.mxu0 0
    %1242 = vmatpush.bf16.msra.mxu0 0
    %1243 = vmatpush.bf16.msra.mxu0 0
    %1244 = vmatpush.bf16.msra.mxu0 0
    %1245 = vmatpush.bf16.msra.mxu0 0
    %1246 = vmatpush.bf16.msra.mxu0 %v1234
    %1247 = vmatpush.bf16.msra.mxu0 %v1233
    %1248 = vmatmul.bf16.gmra.mxu0 %v1238
    %v1249 = vpop.f32.mrf.mxu0
    %v1250 = vadd.f32 0.0, %v1249
    %v1251 = vpop.f32.mrf.mxu0
    %1252 = vdwg.mxu0
    %v1253 = vadd.f32 %v1216, %v1250
    %1254 = vst [vmem:[#allocation3] sm:$0xff] %v1253
    %v1255 = vld [vmem:[%s667] sm:$0xff]
    %1257 = vrot.lane.b32.xlu0 %v1215, 32
    %v1258 = vpop.permute.xlu0 %1257
    %v1259 = vsel %vm250, %v1258, 0
    %1261 = vmatpush.msra.mxu0 0.0
    %1262 = vmatpush.msra.mxu0 0.0
    %1263 = vmatpush.msra.mxu0 0.0
    %1264 = vmatpush.msra.mxu0 0.0
    %1265 = vmatpush.msra.mxu0 0.0
    %1266 = vmatpush.msra.mxu0 0.0
    %1267 = vmatpush.msra.mxu0 0.0
    %1268 = vmatpush.msra.mxu0 0.0
    %1269 = vmatpush.msra.mxu0 0.0
    %1270 = vmatpush.msra.mxu0 0.0
    %1271 = vmatpush.msra.mxu0 0.0
    %1272 = vmatpush.msra.mxu0 0.0
    %1273 = vmatpush.msra.mxu0 %v733
    %1274 = vmatpush.msra.mxu0 %v732
    %1275 = vmatpush.msra.mxu0 %v731
    %1276 = vmatpush.msra.mxu0 %v730
    %1277 = vmatmul.f32.gmra.mxu0 %v1259
    %v1278 = vpop.f32.mrf.mxu0
    %v1279 = vadd.f32 0.0, %v1278
    %1280 = vdwg.mxu0
    %v1281 = vadd.f32 %v1255, %v1279
    %v1282 = vtanh.pop %v1281
    %v1283 = vadd.f32 %v1282, 1.0
    %v1284 = vmul.f32 %v1283, %v1208
    %1286 = vrot.lane.b32.xlu0 %v1282, 64
    %v1287 = vpop.permute.xlu0 %1286
    %v1289 = vmul.f32 %v1283, %v1287
    %1291 = vrot.lane.b32.xlu0 %v1289, 32
    %v1292 = vpop.permute.xlu0 %1291
    %v1294 = vadd.f32 %v1284, %v1292
    %v1295 = vmul.f32 %v1294, 0.5
    %v1296 = vmul.f32 %v1283, 0.5
    %v1297 = vtanh.pop %v1295
    %1299 = vrot.lane.b32.xlu0 %v1297, 64
    %v1300 = vpop.permute.xlu0 %1299
    %v1302 = vmul.f32 %v1296, %v1300
    %v1303 = vld [vmem:[#allocation3] sm:$0xff]
    %v1304 = vpack.c.bf16 %v1302, %v1302
    %v1305 = vld [vmem:[#allocation13 + $0x60] sm:$0xf]
    %v1306 = vld [vmem:[#allocation13 + $0x64] sm:$0xf]
    %v1307 = vld [vmem:[#allocation13 + $0x68] sm:$0xf]
    %v1308 = vld [vmem:[#allocation13 + $0x6c] sm:$0xf]
    %1310 = vrot.lane.b32.xlu0 %v1304, 32
    %v1311 = vpop.permute.xlu0 %1310
    %v1316 = vunpack.c.l.b16 %v1305
    %v1317 = vunpack.c.l.b16 %v1306
    %v1318 = vunpack.c.l.b16 %v1307
    %v1319 = vunpack.c.l.b16 %v1308
    %v1320 = vpack.c.b16 %v1317, %v1316
    %v1321 = vpack.c.b16 %v1319, %v1318
    %v1325 = vsel %vm250, %v1311, 0
    %1327 = vmatpush.bf16.msra.mxu0 0
    %1328 = vmatpush.bf16.msra.mxu0 0
    %1329 = vmatpush.bf16.msra.mxu0 0
    %1330 = vmatpush.bf16.msra.mxu0 0
    %1331 = vmatpush.bf16.msra.mxu0 0
    %1332 = vmatpush.bf16.msra.mxu0 0
    %1333 = vmatpush.bf16.msra.mxu0 %v1321
    %1334 = vmatpush.bf16.msra.mxu0 %v1320
    %1335 = vmatmul.bf16.gmra.mxu0 %v1325
    %v1336 = vpop.f32.mrf.mxu0
    %v1337 = vadd.f32 0.0, %v1336
    %v1338 = vpop.f32.mrf.mxu0
    %1339 = vdwg.mxu0
    %v1340 = vadd.f32 %v1303, %v1337
    %1341 = vst [vmem:[#allocation3] sm:$0xff] %v1340
    %v1342 = vld [vmem:[%s728] sm:$0xff]
    %1344 = vrot.lane.b32.xlu0 %v1302, 32
    %v1345 = vpop.permute.xlu0 %1344
    %v1346 = vsel %vm250, %v1345, 0
    %1348 = vmatpush.msra.mxu0 0.0
    %1349 = vmatpush.msra.mxu0 0.0
    %1350 = vmatpush.msra.mxu0 0.0
    %1351 = vmatpush.msra.mxu0 0.0
    %1352 = vmatpush.msra.mxu0 0.0
    %1353 = vmatpush.msra.mxu0 0.0
    %1354 = vmatpush.msra.mxu0 0.0
    %1355 = vmatpush.msra.mxu0 0.0
    %1356 = vmatpush.msra.mxu0 0.0
    %1357 = vmatpush.msra.mxu0 0.0
    %1358 = vmatpush.msra.mxu0 0.0
    %1359 = vmatpush.msra.mxu0 0.0
    %1360 = vmatpush.msra.mxu0 %v733
    %1361 = vmatpush.msra.mxu0 %v732
    %1362 = vmatpush.msra.mxu0 %v731
    %1363 = vmatpush.msra.mxu0 %v730
    %1364 = vmatmul.f32.gmra.mxu0 %v1346
    %v1365 = vpop.f32.mrf.mxu0
    %v1366 = vadd.f32 0.0, %v1365
    %1367 = vdwg.mxu0
    %v1368 = vadd.f32 %v1342, %v1366
    %v1369 = vtanh.pop %v1368
    %v1370 = vadd.f32 %v1369, 1.0
    %v1371 = vmul.f32 %v1370, %v1295
    %1373 = vrot.lane.b32.xlu0 %v1369, 64
    %v1374 = vpop.permute.xlu0 %1373
    %v1376 = vmul.f32 %v1370, %v1374
    %1378 = vrot.lane.b32.xlu0 %v1376, 32
    %v1379 = vpop.permute.xlu0 %1378
    %v1381 = vadd.f32 %v1371, %v1379
    %v1382 = vmul.f32 %v1381, 0.5
    %v1383 = vmul.f32 %v1370, 0.5
    %v1384 = vtanh.pop %v1382
    %1386 = vrot.lane.b32.xlu0 %v1384, 64
    %v1387 = vpop.permute.xlu0 %1386
    %v1389 = vmul.f32 %v1383, %v1387
    %v1390 = vld [vmem:[#allocation3] sm:$0xff]
    %v1391 = vpack.c.bf16 %v1389, %v1389
    %v1392 = vld [vmem:[#allocation13 + $0x70] sm:$0xf]
    %v1393 = vld [vmem:[#allocation13 + $0x74] sm:$0xf]
    %v1394 = vld [vmem:[#allocation13 + $0x78] sm:$0xf]
    %v1395 = vld [vmem:[#allocation13 + $0x7c] sm:$0xf]
    %1397 = vrot.lane.b32.xlu0 %v1391, 32
    %v1398 = vpop.permute.xlu0 %1397
    %v1403 = vunpack.c.l.b16 %v1392
    %v1404 = vunpack.c.l.b16 %v1393
    %v1405 = vunpack.c.l.b16 %v1394
    %v1406 = vunpack.c.l.b16 %v1395
    %v1407 = vpack.c.b16 %v1404, %v1403
    %v1408 = vpack.c.b16 %v1406, %v1405
    %v1412 = vsel %vm250, %v1398, 0
    %1414 = vmatpush.bf16.msra.mxu0 0
    %1415 = vmatpush.bf16.msra.mxu0 0
    %1416 = vmatpush.bf16.msra.mxu0 0
    %1417 = vmatpush.bf16.msra.mxu0 0
    %1418 = vmatpush.bf16.msra.mxu0 0
    %1419 = vmatpush.bf16.msra.mxu0 0
    %1420 = vmatpush.bf16.msra.mxu0 %v1408
    %1421 = vmatpush.bf16.msra.mxu0 %v1407
    %1422 = vmatmul.bf16.gmra.mxu0 %v1412
    %v1423 = vpop.f32.mrf.mxu0
    %v1424 = vadd.f32 0.0, %v1423
    %v1425 = vpop.f32.mrf.mxu0
    %1426 = vdwg.mxu0
    %v1427 = vadd.f32 %v1390, %v1424
    %1428 = vst [vmem:[#allocation3] sm:$0xff] %v1427
    %v1429 = vld [vmem:[#allocation3] sm:$0xff]
    %v1430 = vld [vmem:[%s9] sm:$0x1]
    %v1432 = vperm.slane %v1430, 0
    %v1434 = vadd.f32 %v1429, %v1432
    %vm1435 = vcmp.ge.f32.partialorder %v1434, 0.0
    %v1436 = vmul.f32 %v1434, 0.01
    %v1437 = vsel %vm1435, %v1434, %v1436
    %v1438 = vpack.c.bf16 %v1437, %v1437
    %v1439 = vld [vmem:[#allocation15] sm:$0xf]
    %v1440 = vld [vmem:[#allocation15 + $0x4] sm:$0xf]
    %v1441 = vld [vmem:[#allocation15 + $0x8] sm:$0xf]
    %v1442 = vld [vmem:[#allocation15 + $0xc] sm:$0xf]
    %v1443 = vld [vmem:[#allocation15 + $0x10] sm:$0xf]
    %v1444 = vld [vmem:[#allocation15 + $0x14] sm:$0xf]
    %v1445 = vld [vmem:[#allocation15 + $0x18] sm:$0xf]
    %v1446 = vld [vmem:[#allocation15 + $0x1c] sm:$0xf]
    %v1447 = vld [vmem:[#allocation15 + $0x20] sm:$0xf]
    %v1448 = vld [vmem:[#allocation15 + $0x24] sm:$0xf]
    %v1449 = vld [vmem:[#allocation15 + $0x28] sm:$0xf]
    %v1450 = vld [vmem:[#allocation15 + $0x2c] sm:$0xf]
    %v1451 = vld [vmem:[#allocation15 + $0x30] sm:$0xf]
    %v1452 = vld [vmem:[#allocation15 + $0x34] sm:$0xf]
    %v1453 = vld [vmem:[#allocation15 + $0x38] sm:$0xf]
    %v1454 = vld [vmem:[#allocation15 + $0x3c] sm:$0xf]
    %v1455 = vld [vmem:[%s11] sm:$0x1]
    %v1457 = vperm.slane %v1455, 0
    %v1475 = vunpack.c.l.b16 %v1439
    %v1476 = vunpack.c.l.b16 %v1440
    %v1477 = vunpack.c.l.b16 %v1441
    %v1478 = vunpack.c.l.b16 %v1442
    %v1479 = vunpack.c.l.b16 %v1443
    %v1480 = vunpack.c.l.b16 %v1444
    %v1481 = vunpack.c.l.b16 %v1445
    %v1482 = vunpack.c.l.b16 %v1446
    %v1483 = vunpack.c.l.b16 %v1447
    %v1484 = vunpack.c.l.b16 %v1448
    %v1485 = vunpack.c.l.b16 %v1449
    %v1486 = vunpack.c.l.b16 %v1450
    %v1487 = vunpack.c.l.b16 %v1451
    %v1488 = vunpack.c.l.b16 %v1452
    %v1489 = vunpack.c.l.b16 %v1453
    %v1490 = vunpack.c.l.b16 %v1454
    %v1491 = vpack.c.b16 %v1476, %v1475
    %v1492 = vpack.c.b16 %v1478, %v1477
    %v1493 = vpack.c.b16 %v1480, %v1479
    %v1494 = vpack.c.b16 %v1482, %v1481
    %v1495 = vpack.c.b16 %v1484, %v1483
    %v1496 = vpack.c.b16 %v1486, %v1485
    %v1497 = vpack.c.b16 %v1488, %v1487
    %v1498 = vpack.c.b16 %v1490, %v1489
    %1507 = vmatpush.bf16.msra.mxu0 %v1498
    %1508 = vmatpush.bf16.msra.mxu0 %v1497
    %1509 = vmatpush.bf16.msra.mxu0 %v1496
    %1510 = vmatpush.bf16.msra.mxu0 %v1495
    %1511 = vmatpush.bf16.msra.mxu0 %v1494
    %1512 = vmatpush.bf16.msra.mxu0 %v1493
    %1513 = vmatpush.bf16.msra.mxu0 %v1492
    %1514 = vmatpush.bf16.msra.mxu0 %v1491
    %1515 = vmatmul.bf16.gmra.mxu0 %v1438
    %v1516 = vpop.f32.mrf.mxu0
    %v1517 = vadd.f32 %v1457, %v1516
    %v1518 = vpop.f32.mrf.mxu0
    %1519 = vdwg.mxu0
    %vm1520 = vcmp.ge.f32.partialorder %v1517, 0.0
    %v1521 = vmul.f32 %v1517, 0.01
    %v1522 = vsel %vm1520, %v1517, %v1521
    %v1523 = vpack.c.bf16 %v1522, %v1522
    %v1524 = vld [vmem:[#allocation16] sm:$0xf]
    %v1525 = vld [vmem:[#allocation16 + $0x4] sm:$0xf]
    %v1526 = vld [vmem:[#allocation16 + $0x8] sm:$0xf]
    %v1527 = vld [vmem:[#allocation16 + $0xc] sm:$0xf]
    %v1528 = vld [vmem:[#allocation16 + $0x10] sm:$0xf]
    %v1529 = vld [vmem:[#allocation16 + $0x14] sm:$0xf]
    %v1530 = vld [vmem:[#allocation16 + $0x18] sm:$0xf]
    %v1531 = vld [vmem:[#allocation16 + $0x1c] sm:$0xf]
    %v1532 = vld [vmem:[#allocation16 + $0x20] sm:$0xf]
    %v1533 = vld [vmem:[#allocation16 + $0x24] sm:$0xf]
    %v1534 = vld [vmem:[#allocation16 + $0x28] sm:$0xf]
    %v1535 = vld [vmem:[#allocation16 + $0x2c] sm:$0xf]
    %v1536 = vld [vmem:[#allocation16 + $0x30] sm:$0xf]
    %v1537 = vld [vmem:[#allocation16 + $0x34] sm:$0xf]
    %v1538 = vld [vmem:[#allocation16 + $0x38] sm:$0xf]
    %v1539 = vld [vmem:[#allocation16 + $0x3c] sm:$0xf]
    %v1540 = vld [vmem:[%s13] sm:$0x1]
    %v1542 = vperm.slane %v1540, 0
    %v1560 = vunpack.c.l.b16 %v1524
    %v1561 = vunpack.c.l.b16 %v1525
    %v1562 = vunpack.c.l.b16 %v1526
    %v1563 = vunpack.c.l.b16 %v1527
    %v1564 = vunpack.c.l.b16 %v1528
    %v1565 = vunpack.c.l.b16 %v1529
    %v1566 = vunpack.c.l.b16 %v1530
    %v1567 = vunpack.c.l.b16 %v1531
    %v1568 = vunpack.c.l.b16 %v1532
    %v1569 = vunpack.c.l.b16 %v1533
    %v1570 = vunpack.c.l.b16 %v1534
    %v1571 = vunpack.c.l.b16 %v1535
    %v1572 = vunpack.c.l.b16 %v1536
    %v1573 = vunpack.c.l.b16 %v1537
    %v1574 = vunpack.c.l.b16 %v1538
    %v1575 = vunpack.c.l.b16 %v1539
    %v1576 = vpack.c.b16 %v1561, %v1560
    %v1577 = vpack.c.b16 %v1563, %v1562
    %v1578 = vpack.c.b16 %v1565, %v1564
    %v1579 = vpack.c.b16 %v1567, %v1566
    %v1580 = vpack.c.b16 %v1569, %v1568
    %v1581 = vpack.c.b16 %v1571, %v1570
    %v1582 = vpack.c.b16 %v1573, %v1572
    %v1583 = vpack.c.b16 %v1575, %v1574
    %1592 = vmatpush.bf16.msra.mxu0 %v1583
    %1593 = vmatpush.bf16.msra.mxu0 %v1582
    %1594 = vmatpush.bf16.msra.mxu0 %v1581
    %1595 = vmatpush.bf16.msra.mxu0 %v1580
    %1596 = vmatpush.bf16.msra.mxu0 %v1579
    %1597 = vmatpush.bf16.msra.mxu0 %v1578
    %1598 = vmatpush.bf16.msra.mxu0 %v1577
    %1599 = vmatpush.bf16.msra.mxu0 %v1576
    %1600 = vmatmul.bf16.gmra.mxu0 %v1523
    %v1601 = vpop.f32.mrf.mxu0
    %v1602 = vadd.f32 %v1542, %v1601
    %v1603 = vpop.f32.mrf.mxu0
    %1604 = vdwg.mxu0
    %vm1605 = vcmp.ge.f32.partialorder %v1602, 0.0
    %v1606 = vmul.f32 %v1602, 0.01
    %v1607 = vsel %vm1605, %v1602, %v1606
    %v1608 = vpack.c.bf16 %v1607, %v1607
    %v1609 = vld [vmem:[#allocation18] sm:$0xf]
    %v1610 = vld [vmem:[#allocation18 + $0x4] sm:$0xf]
    %v1611 = vld [vmem:[#allocation18 + $0x8] sm:$0xf]
    %v1612 = vld [vmem:[#allocation18 + $0xc] sm:$0xf]
    %v1613 = vld [vmem:[#allocation18 + $0x10] sm:$0xf]
    %v1614 = vld [vmem:[#allocation18 + $0x14] sm:$0xf]
    %v1615 = vld [vmem:[#allocation18 + $0x18] sm:$0xf]
    %v1616 = vld [vmem:[#allocation18 + $0x1c] sm:$0xf]
    %v1617 = vld [vmem:[#allocation18 + $0x20] sm:$0xf]
    %v1618 = vld [vmem:[#allocation18 + $0x24] sm:$0xf]
    %v1619 = vld [vmem:[#allocation18 + $0x28] sm:$0xf]
    %v1620 = vld [vmem:[#allocation18 + $0x2c] sm:$0xf]
    %v1621 = vld [vmem:[#allocation18 + $0x30] sm:$0xf]
    %v1622 = vld [vmem:[#allocation18 + $0x34] sm:$0xf]
    %v1623 = vld [vmem:[#allocation18 + $0x38] sm:$0xf]
    %v1624 = vld [vmem:[#allocation18 + $0x3c] sm:$0xf]
    %v1625 = vld [vmem:[%s15] sm:$0x1]
    %v1627 = vperm.slane %v1625, 0
    %v1645 = vunpack.c.l.b16 %v1609
    %v1646 = vunpack.c.l.b16 %v1610
    %v1647 = vunpack.c.l.b16 %v1611
    %v1648 = vunpack.c.l.b16 %v1612
    %v1649 = vunpack.c.l.b16 %v1613
    %v1650 = vunpack.c.l.b16 %v1614
    %v1651 = vunpack.c.l.b16 %v1615
    %v1652 = vunpack.c.l.b16 %v1616
    %v1653 = vunpack.c.l.b16 %v1617
    %v1654 = vunpack.c.l.b16 %v1618
    %v1655 = vunpack.c.l.b16 %v1619
    %v1656 = vunpack.c.l.b16 %v1620
    %v1657 = vunpack.c.l.b16 %v1621
    %v1658 = vunpack.c.l.b16 %v1622
    %v1659 = vunpack.c.l.b16 %v1623
    %v1660 = vunpack.c.l.b16 %v1624
    %v1661 = vpack.c.b16 %v1646, %v1645
    %v1662 = vpack.c.b16 %v1648, %v1647
    %v1663 = vpack.c.b16 %v1650, %v1649
    %v1664 = vpack.c.b16 %v1652, %v1651
    %v1665 = vpack.c.b16 %v1654, %v1653
    %v1666 = vpack.c.b16 %v1656, %v1655
    %v1667 = vpack.c.b16 %v1658, %v1657
    %v1668 = vpack.c.b16 %v1660, %v1659
    %1677 = vmatpush.bf16.msra.mxu0 %v1668
    %1678 = vmatpush.bf16.msra.mxu0 %v1667
    %1679 = vmatpush.bf16.msra.mxu0 %v1666
    %1680 = vmatpush.bf16.msra.mxu0 %v1665
    %1681 = vmatpush.bf16.msra.mxu0 %v1664
    %1682 = vmatpush.bf16.msra.mxu0 %v1663
    %1683 = vmatpush.bf16.msra.mxu0 %v1662
    %1684 = vmatpush.bf16.msra.mxu0 %v1661
    %1685 = vmatmul.bf16.gmra.mxu0 %v1608
    %v1686 = vpop.f32.mrf.mxu0
    %v1687 = vadd.f32 %v1627, %v1686
    %v1688 = vpop.f32.mrf.mxu0
    %1689 = vdwg.mxu0
    %1690 = vst [vmem:[#allocation19] sm:$0xff] %v1687
    // Predicated region
    $region102: #{tpu_custom_call.1} parent=1 // pred_check
      _
    $region103: #{tpu_custom_call.1} parent=1 // pred_check_branch
      %1692 = sbr.rel (0) target = $region105
    $region104: #{tpu_custom_call.1} parent=1 // pred_region
      %1694 = vsyncadd [#allocation6], 0
      %s1696 = sshll.u32 [#allocation19], 4
      %s1697 = int_to_ptr.vmem [resolvable:$true] %s1696
      %s1698 = sshll.u32 %s16, 4
      %s1699 = int_to_ptr.hbm [resolvable:$true] %s1698
      %1701 = dma.vmem_to_hbm [thread:$0]  %s1697, 128, %s1699, [#allocation6]
    $region105: #{tpu_custom_call.1} parent=1 // pred_fallthru
      _
    // Predicated region
    $region106: #{tpu_custom_call.1} parent=1 // pred_check
      _
    $region107: #{tpu_custom_call.1} parent=1 // pred_check_branch
      %1703 = sbr.rel (0) target = $region109
    $region108: #{tpu_custom_call.1} parent=1 // pred_region
      %1705 = dma.done [#allocation6], 128
    $region109: #{tpu_custom_call.1} parent=1 // pred_fallthru
      _
    %1706 = vsyncpa [#allocation5], 1
    %1707 = vsyncpa [#allocation8], 1
    %1708 = vsyncpa [#allocation11], 1
    %1709 = vsyncpa [#allocation14], 1
    %1710 = vsyncpa [#allocation17], 1
    %1711 = vsyncpa [#allocation6], 1

</llo_original>
